<compile_context>
chip_gen: v5e
topology: v5e:2x2
jax: 0.10.0
libtpu: 0.0.40
codegen_flags: <defaults>
</compile_context>

<pallas_src>
import jax
import jax.numpy as jnp
from jax import lax
from jax.experimental import pallas as pl
from jax.experimental.pallas import tpu as pltpu
import numpy as np

BATCH = 1            # as in the module spec (X1 = randn(1, 256))
DIM = 256            # input_size == hidden_size (coherent interpretation)
NUM_LAYERS = 2       # -> exactly 1 GRUCell, as in the reference module
USE_BF16_WEIGHTS = True


def _gelu_exact(x):
    # torch.nn.functional.gelu default: 0.5 * x * (1 + erf(x / sqrt(2)))
    return 0.5 * x * (1.0 + lax.erf(x * (1.0 / float(np.sqrt(2.0)))))


def model_kernel(xh_ref, w_g_ref, b_g_ref, w_hn_ref, b_hn_ref, w2_ref, b2_ref, o_ref):
    """Single-tile kernel: fused gate matmul + h_n matmul + GRU gate math + GELU + folded decoder."""
    H = o_ref.shape[-1]

    xh = xh_ref[...]                       # (B, 2H) f32, [X1 | h0]
    h0 = xh[:, H:2 * H]                    # lane-aligned slice (multiple of 128)

    mxu_dtype = w_g_ref.dtype

    # Fused gate matmul: [x1, h0] @ w_g -> [ r_sum | z_sum | i_n ] (decoder folded into i_*).
    g = jnp.dot(xh.astype(mxu_dtype), w_g_ref[...],
                preferred_element_type=jnp.float32) + b_g_ref[...]        # (B, 3H) f32

    # Separate h_n = h0 @ W_hn + b_hn (kept apart so PyTorch's r*(h_n + b_hn) is exact).
    h_n = jnp.dot(h0.astype(mxu_dtype), w_hn_ref[...],
                  preferred_element_type=jnp.float32) + b_hn_ref[...]     # (B, H) f32

    # GRU gate math (PyTorch gate order r, z, n) — all in f32 on the VPU/EUP.
    r = jax.nn.sigmoid(g[:, 0:H])
    z = jax.nn.sigmoid(g[:, H:2 * H])
    i_n = g[:, 2 * H:3 * H]
    n = jnp.tanh(i_n + r * h_n)
    h_new = (1.0 - z) * n + z * h0

    # TODO(synk): training-mode dropout (p=0.1) omitted; inference identity used.
    d = _gelu_exact(h_new)

    # Folded trailing decoder chain: decoder(decoder(d)) == d @ W2 + b2.
    out = jnp.dot(d.astype(mxu_dtype), w2_ref[...],
                  preferred_element_type=jnp.float32) + b2_ref[...]       # (B, H) f32
    o_ref[...] = out.astype(o_ref.dtype)


def fold_params(w_dec, b_dec, w_ih, w_hh, b_ih, b_hh):
    """Fold constant inference weights (f32 math) and cast the fused weights to bf16.

    Call ONCE ahead of time; the results are the only parameters the per-call
    forward needs (no per-call weight FLOPs or casts).
    """
    D, H = w_dec.shape                         # D == H

    # x1 -> decoder -> GRU input gates, folded.
    w_eff = w_dec @ w_ih                       # (D, 3H)
    b_eff = b_dec @ w_ih + b_ih                # (1, 3H)

    # Fused gate weight (2H, 3H): columns [ r_sum | z_sum | i_n ].
    # Only the (H, H) h-rows x i_n block is zero.
    zH = jnp.zeros((H, H), jnp.float32)
    w_g = jnp.concatenate([
        w_eff,                                                     # x-rows: all 3 gates
        jnp.concatenate([w_hh[:, :2 * H], zH], axis=1),            # h-rows: r, z only
    ], axis=0)                                 # (D + H, 3H)
    b_g = jnp.concatenate([b_eff[:, :2 * H] + b_hh[:, :2 * H],
                           b_eff[:, 2 * H:]], axis=1)              # (1, 3H)

    # Separate h_n weight/bias (stays outside the fused matmul).
    w_hn = w_hh[:, 2 * H:]                     # (H, H)
    b_hn = b_hh[:, 2 * H:]                     # (1, H)

    # decoder applied twice at the end collapses to one affine map (D == H).
    w2 = w_dec @ w_dec                         # (H, H)
    b2 = b_dec @ w_dec + b_dec                 # (1, H)

    wdt = jnp.bfloat16 if USE_BF16_WEIGHTS else jnp.float32
    return (w_g.astype(wdt), b_g, w_hn.astype(wdt), b_hn, w2.astype(wdt), b2)


@jax.jit
def model_forward(x1, x2, w_g, b_g, w_hn, b_hn, w2, b2):
    """Slim per-call forward: concat activations + one Pallas kernel launch."""
    B = x1.shape[0]
    H = x2.shape[-1]

    # Hoisted activation concat for the fused gate matmul ([X1 | h0]).
    xh = jnp.concatenate([x1, x2], axis=-1)    # (B, D + H)

    vmem = lambda: pl.BlockSpec(memory_space=pltpu.MemorySpace.VMEM)
    return pl.pallas_call(
        model_kernel,
        out_shape=jax.ShapeDtypeStruct((B, H), jnp.float32),
        in_specs=[vmem() for _ in range(7)],
        out_specs=vmem(),
    )(xh, w_g, b_g, w_hn, b_hn, w2, b2)


def reference_forward(x1, x2, w_dec, b_dec, w_ih, w_hh, b_ih, b_hh):
    """Pure-JAX f32 reference of the original (unfolded) forward."""
    H = x2.shape[-1]
    d = x1 @ w_dec + b_dec
    gi = d @ w_ih + b_ih
    gh = x2 @ w_hh + b_hh
    r = jax.nn.sigmoid(gi[:, 0:H] + gh[:, 0:H])
    z = jax.nn.sigmoid(gi[:, H:2 * H] + gh[:, H:2 * H])
    n = jnp.tanh(gi[:, 2 * H:] + r * gh[:, 2 * H:])
    h_new = (1.0 - z) * n + z * x2
    d = jax.nn.gelu(h_new, approximate=False)
    d = d @ w_dec + b_dec
    d = d @ w_dec + b_dec
    return d


if __name__ == "__main__":
    key = jax.random.PRNGKey(0)
    keys = jax.random.split(key, 8)

    B, D, H = BATCH, DIM, DIM

    x1 = jax.random.normal(keys[0], (B, D), jnp.float32)
    x2 = jax.random.normal(keys[1], (B, H), jnp.float32)

    # Deterministic parameter init (scaled normal; shapes follow the module).
    s_dec = 1.0 / np.sqrt(D)
    s_gru = 1.0 / np.sqrt(H)
    w_dec = jax.random.normal(keys[2], (D, H), jnp.float32) * s_dec      # Linear weight^T
    b_dec = jax.random.normal(keys[3], (1, H), jnp.float32) * s_dec
    w_ih = jax.random.normal(keys[4], (H, 3 * H), jnp.float32) * s_gru   # GRUCell weight_ih^T
    w_hh = jax.random.normal(keys[5], (H, 3 * H), jnp.float32) * s_gru   # GRUCell weight_hh^T
    b_ih = jax.random.normal(keys[6], (1, 3 * H), jnp.float32) * s_gru
    b_hh = jax.random.normal(keys[7], (1, 3 * H), jnp.float32) * s_gru

    # --- one-time weight folding (NOT in the per-call path) ---
    folded = fold_params(w_dec, b_dec, w_ih, w_hh, b_ih, b_hh)
    folded = jax.block_until_ready(folded)

    # --- per-call forward: the Pallas kernel is the only device compute ---
    out = model_forward(x1, x2, *folded)
    out = jax.block_until_ready(out)

    ref = reference_forward(x1, x2, w_dec, b_dec, w_ih, w_hh, b_ih, b_hh)
    # Tolerance relaxed vs. pure-f32 because the folded/composed weights are
    # quantized to bf16 and the constant matmul chain is algebraically re-associated.
    np.testing.assert_allclose(np.asarray(out), np.asarray(ref), rtol=5e-2, atol=5e-2)

    print("KERNEL_OK")
</pallas_src>

<mosaic_0001>
module attributes {stable_mosaic.version = 11 : i64} {
  func.func @model_kernel(%arg0: memref<1x512xf32, #tpu.memory_space<vmem>>, %arg1: memref<512x768xbf16, #tpu.memory_space<vmem>>, %arg2: memref<1x768xf32, #tpu.memory_space<vmem>>, %arg3: memref<256x256xbf16, #tpu.memory_space<vmem>>, %arg4: memref<1x256xf32, #tpu.memory_space<vmem>>, %arg5: memref<256x256xbf16, #tpu.memory_space<vmem>>, %arg6: memref<1x256xf32, #tpu.memory_space<vmem>>, %arg7: memref<1x256xf32, #tpu.memory_space<vmem>>) attributes {dimension_semantics = [], scalar_prefetch = 0 : i64, scratch_operands = 0 : i64, tpu.core_type = #tpu.core_type<tc>} {
    %c0 = arith.constant 0 : index
    %c0_0 = arith.constant 0 : index
    %0 = vector.load %arg0[%c0, %c0_0] : memref<1x512xf32, #tpu.memory_space<vmem>>, vector<1x512xf32>
    %1 = vector.extract_strided_slice %0 {offsets = [0, 256], sizes = [1, 256], strides = [1, 1]} : vector<1x512xf32> to vector<1x256xf32>
    %2 = arith.truncf %0 : vector<1x512xf32> to vector<1x512xbf16>
    %c0_1 = arith.constant 0 : index
    %c0_2 = arith.constant 0 : index
    %3 = vector.load %arg1[%c0_1, %c0_2] : memref<512x768xbf16, #tpu.memory_space<vmem>>, vector<512x768xbf16>
    %cst = arith.constant dense<0.000000e+00> : vector<1x768xf32>
    %4 = tpu.matmul %2, %3, %cst {dimension_numbers = #tpu.dot_dimension_numbers<[1], [0], [0], [1], [0, 0, 1, 1], [], []>} : vector<1x512xbf16>, vector<512x768xbf16>, vector<1x768xf32> -> vector<1x768xf32>
    %c0_3 = arith.constant 0 : index
    %c0_4 = arith.constant 0 : index
    %5 = vector.load %arg2[%c0_3, %c0_4] : memref<1x768xf32, #tpu.memory_space<vmem>>, vector<1x768xf32>
    %6 = arith.addf %4, %5 : vector<1x768xf32>
    %7 = arith.truncf %1 : vector<1x256xf32> to vector<1x256xbf16>
    %c0_5 = arith.constant 0 : index
    %c0_6 = arith.constant 0 : index
    %8 = vector.load %arg3[%c0_5, %c0_6] : memref<256x256xbf16, #tpu.memory_space<vmem>>, vector<256x256xbf16>
    %cst_7 = arith.constant dense<0.000000e+00> : vector<1x256xf32>
    %9 = tpu.matmul %7, %8, %cst_7 {dimension_numbers = #tpu.dot_dimension_numbers<[1], [0], [0], [1], [0, 0, 1, 1], [], []>} : vector<1x256xbf16>, vector<256x256xbf16>, vector<1x256xf32> -> vector<1x256xf32>
    %c0_8 = arith.constant 0 : index
    %c0_9 = arith.constant 0 : index
    %10 = vector.load %arg4[%c0_8, %c0_9] : memref<1x256xf32, #tpu.memory_space<vmem>>, vector<1x256xf32>
    %11 = arith.addf %9, %10 : vector<1x256xf32>
    %12 = vector.extract_strided_slice %6 {offsets = [0, 0], sizes = [1, 256], strides = [1, 1]} : vector<1x768xf32> to vector<1x256xf32>
    %13 = arith.negf %12 : vector<1x256xf32>
    %14 = math.exp %13 : vector<1x256xf32>
    %cst_10 = arith.constant 1.000000e+00 : f32
    %15 = vector.broadcast %cst_10 : f32 to vector<1x256xf32>
    %16 = arith.addf %15, %14 : vector<1x256xf32>
    %17 = arith.divf %15, %16 : vector<1x256xf32>
    %18 = vector.extract_strided_slice %6 {offsets = [0, 256], sizes = [1, 256], strides = [1, 1]} : vector<1x768xf32> to vector<1x256xf32>
    %19 = arith.negf %18 : vector<1x256xf32>
    %20 = math.exp %19 : vector<1x256xf32>
    %cst_11 = arith.constant 1.000000e+00 : f32
    %21 = vector.broadcast %cst_11 : f32 to vector<1x256xf32>
    %22 = arith.addf %21, %20 : vector<1x256xf32>
    %23 = arith.divf %21, %22 : vector<1x256xf32>
    %24 = vector.extract_strided_slice %6 {offsets = [0, 512], sizes = [1, 256], strides = [1, 1]} : vector<1x768xf32> to vector<1x256xf32>
    %25 = arith.mulf %17, %11 : vector<1x256xf32>
    %26 = arith.addf %24, %25 : vector<1x256xf32>
    %27 = math.tanh %26 : vector<1x256xf32>
    %cst_12 = arith.constant 1.000000e+00 : f32
    %28 = vector.broadcast %cst_12 : f32 to vector<1x256xf32>
    %29 = arith.subf %28, %23 : vector<1x256xf32>
    %30 = arith.mulf %29, %27 : vector<1x256xf32>
    %31 = arith.mulf %23, %1 : vector<1x256xf32>
    %32 = arith.addf %30, %31 : vector<1x256xf32>
    %cst_13 = arith.constant 5.000000e-01 : f32
    %33 = vector.broadcast %cst_13 : f32 to vector<1x256xf32>
    %34 = arith.mulf %33, %32 : vector<1x256xf32>
    %cst_14 = arith.constant 0.707106769 : f32
    %35 = vector.broadcast %cst_14 : f32 to vector<1x256xf32>
    %36 = arith.mulf %32, %35 : vector<1x256xf32>
    %37 = math.erf %36 : vector<1x256xf32>
    %cst_15 = arith.constant 1.000000e+00 : f32
    %38 = vector.broadcast %cst_15 : f32 to vector<1x256xf32>
    %39 = arith.addf %38, %37 : vector<1x256xf32>
    %40 = arith.mulf %34, %39 : vector<1x256xf32>
    %41 = arith.truncf %40 : vector<1x256xf32> to vector<1x256xbf16>
    %c0_16 = arith.constant 0 : index
    %c0_17 = arith.constant 0 : index
    %42 = vector.load %arg5[%c0_16, %c0_17] : memref<256x256xbf16, #tpu.memory_space<vmem>>, vector<256x256xbf16>
    %cst_18 = arith.constant dense<0.000000e+00> : vector<1x256xf32>
    %43 = tpu.matmul %41, %42, %cst_18 {dimension_numbers = #tpu.dot_dimension_numbers<[1], [0], [0], [1], [0, 0, 1, 1], [], []>} : vector<1x256xbf16>, vector<256x256xbf16>, vector<1x256xf32> -> vector<1x256xf32>
    %c0_19 = arith.constant 0 : index
    %c0_20 = arith.constant 0 : index
    %44 = vector.load %arg6[%c0_19, %c0_20] : memref<1x256xf32, #tpu.memory_space<vmem>>, vector<1x256xf32>
    %45 = arith.addf %43, %44 : vector<1x256xf32>
    %c0_21 = arith.constant 0 : index
    %c0_22 = arith.constant 0 : index
    %46 = vector.load %arg7[%c0_21, %c0_22] : memref<1x256xf32, #tpu.memory_space<vmem>>, vector<1x256xf32>
    tpu.vector_store %arg7[%c0_21, %c0_22], %45 {strides = array<i32>} : memref<1x256xf32, #tpu.memory_space<vmem>>, vector<1x256xf32>,
    return
  }
}

</mosaic_0001>

<llo_original>
// kernel: model_forward.1
$region0: #{model_forward.1}
  #allocation0 [shape = 'u32[]', space=smem, size = 0x4, offset = 0x4, fixed_abs, tag = 'smem constant byte address 0x4 - core index']
  #allocation1 [shape = 'u32[72,128]{1,0:T(1,128)}', space=vmem, size = 0x9000, scoped, tag = 'internal scratch']
  %s0 = inlined_call_operand.vmem [shape: f32[1,512], index: 0, kind: input, shape index: {}]
  %s1 = inlined_call_operand.hbm [shape: bf16[512,768], index: 1, kind: input, shape index: {}]
  %s2 = inlined_call_operand.vmem [shape: f32[1,768], index: 2, kind: input, shape index: {}]
  %s3 = inlined_call_operand.hbm [shape: bf16[256,256], index: 3, kind: input, shape index: {}]
  %s4 = inlined_call_operand.vmem [shape: f32[1,256], index: 4, kind: input, shape index: {}]
  %s5 = inlined_call_operand.hbm [shape: bf16[256,256], index: 5, kind: input, shape index: {}]
  %s6 = inlined_call_operand.vmem [shape: f32[1,256], index: 6, kind: input, shape index: {}]
  %s7 = inlined_call_operand.hbm [shape: f32[1,256], index: 7, kind: output, shape index: {}]
  %s8 = sld [smem:[#allocation0]]
  $region50: #{model_forward.1} parent=0
    _
  %s10 = ssub.s32 1, %s8
  %s11 = scalar_select 0, %s10, %s8
  $region1: #{model_forward.1} parent=0
    #allocation2 [shape = 'u8[786432]{0}', space=vmem, size = 0xc0000, scoped, tag = 'input window, operand 1, single buffered']
    #allocation3 [shape = 's32[1]{0}', space=sflag, size = 0x4, scoped, tag = 'scoped memory for model_forward.1']
    #allocation4 [shape = 's32[1]{0}', space=sflag, size = 0x4, scoped, tag = 'scoped memory for model_forward.1']
    #allocation5 [shape = 'u8[131072]{0}', space=vmem, size = 0x20000, scoped, tag = 'input window, operand 3, single buffered']
    #allocation6 [shape = 's32[1]{0}', space=sflag, size = 0x4, scoped, tag = 'scoped memory for model_forward.1']
    #allocation7 [shape = 'u8[131072]{0}', space=vmem, size = 0x20000, scoped, tag = 'input window, operand 5, single buffered']
    #allocation8 [shape = 'u8[1024]{0}', space=vmem, size = 0x400, scoped, tag = 'output window, operand 0, single buffered']
    %12 = vsyncpa [#allocation3], 0
    %13 = vsyncpa [#allocation6], 0
    %14 = vsyncpa [#allocation4], 0
    // Predicated region
    $region2: #{model_forward.1} parent=1 // pred_check
      _
    $region3: #{model_forward.1} parent=1 // pred_check_branch
      %16 = sbr.rel (0) target = $region5
    $region4: #{model_forward.1} parent=1 // pred_region
      _
    $region5: #{model_forward.1} parent=1 // pred_fallthru
      _
    // Predicated region
    $region6: #{model_forward.1} parent=1 // pred_check
      _
    $region7: #{model_forward.1} parent=1 // pred_check_branch
      %18 = sbr.rel (0) target = $region9
    $region8: #{model_forward.1} parent=1 // pred_region
      %20 = vsyncadd [#allocation3], 0
      %s21 = sshll.u32 %s1, 4
      %s22 = int_to_ptr.hbm [resolvable:$true] %s21
      %s23 = sshll.u32 [#allocation2], 4
      %s24 = int_to_ptr.vmem [resolvable:$true] %s23
      %29 = dma.hbm_to_vmem [thread:$0]  %s22, 24576, %s24, [#allocation3], 384, 384, 24
    $region9: #{model_forward.1} parent=1 // pred_fallthru
      _
    // Predicated region
    $region10: #{model_forward.1} parent=1 // pred_check
      _
    $region11: #{model_forward.1} parent=1 // pred_check_branch
      %31 = sbr.rel (0) target = $region13
    $region12: #{model_forward.1} parent=1 // pred_region
      _
    $region13: #{model_forward.1} parent=1 // pred_fallthru
      _
    // Predicated region
    $region14: #{model_forward.1} parent=1 // pred_check
      _
    $region15: #{model_forward.1} parent=1 // pred_check_branch
      %33 = sbr.rel (0) target = $region17
    $region16: #{model_forward.1} parent=1 // pred_region
      %35 = vsyncadd [#allocation6], 0
      %s36 = sshll.u32 %s3, 4
      %s37 = int_to_ptr.hbm [resolvable:$true] %s36
      %s38 = sshll.u32 [#allocation5], 4
      %s39 = int_to_ptr.vmem [resolvable:$true] %s38
      %44 = dma.hbm_to_vmem [thread:$0]  %s37, 4096, %s39, [#allocation6], 128, 128, 8
    $region17: #{model_forward.1} parent=1 // pred_fallthru
      _
    // Predicated region
    $region18: #{model_forward.1} parent=1 // pred_check
      _
    $region19: #{model_forward.1} parent=1 // pred_check_branch
      %46 = sbr.rel (0) target = $region21
    $region20: #{model_forward.1} parent=1 // pred_region
      _
    $region21: #{model_forward.1} parent=1 // pred_fallthru
      _
    // Predicated region
    $region22: #{model_forward.1} parent=1 // pred_check
      _
    $region23: #{model_forward.1} parent=1 // pred_check_branch
      %48 = sbr.rel (0) target = $region25
    $region24: #{model_forward.1} parent=1 // pred_region
      %50 = vsyncadd [#allocation6], 0
      %s51 = sshll.u32 %s5, 4
      %s52 = int_to_ptr.hbm [resolvable:$true] %s51
      %s53 = sshll.u32 [#allocation7], 4
      %s54 = int_to_ptr.vmem [resolvable:$true] %s53
      %59 = dma.hbm_to_vmem [thread:$0]  %s52, 4096, %s54, [#allocation6], 128, 128, 8
    $region25: #{model_forward.1} parent=1 // pred_fallthru
      _
    // Predicated region
    $region26: #{model_forward.1} parent=1 // pred_check
      _
    $region27: #{model_forward.1} parent=1 // pred_check_branch
      %61 = sbr.rel (0) target = $region29
    $region28: #{model_forward.1} parent=1 // pred_region
      _
    $region29: #{model_forward.1} parent=1 // pred_fallthru
      _
    // Predicated region
    $region30: #{model_forward.1} parent=1 // pred_check
      _
    $region31: #{model_forward.1} parent=1 // pred_check_branch
      %63 = sbr.rel (0) target = $region33
    $region32: #{model_forward.1} parent=1 // pred_region
      %65 = dma.done [#allocation3], 24576
    $region33: #{model_forward.1} parent=1 // pred_fallthru
      _
    // Predicated region
    $region34: #{model_forward.1} parent=1 // pred_check
      _
    $region35: #{model_forward.1} parent=1 // pred_check_branch
      %67 = sbr.rel (0) target = $region37
    $region36: #{model_forward.1} parent=1 // pred_region
      %69 = dma.done [#allocation6], 4096
    $region37: #{model_forward.1} parent=1 // pred_fallthru
      _
    // Predicated region
    $region38: #{model_forward.1} parent=1 // pred_check
      _
    $region39: #{model_forward.1} parent=1 // pred_check_branch
      %71 = sbr.rel (0) target = $region41
    $region40: #{model_forward.1} parent=1 // pred_region
      %73 = dma.done [#allocation6], 4096
    $region41: #{model_forward.1} parent=1 // pred_fallthru
      _
    %v74 = vld [vmem:[%s0] sm:$0xf]
    %v76 = vperm.slane %v74, 0
    %v77 = vperm.slane %v74, 1
    %v78 = vperm.slane %v74, 2
    %v79 = vperm.slane %v74, 3
    %v84 = vpack.c.bf16 %v76, %v76
    %v85 = vpack.c.bf16 %v77, %v77
    %v86 = vpack.c.bf16 %v78, %v78
    %v87 = vpack.c.bf16 %v79, %v79
    %v88 = vld [vmem:[#allocation2] sm:$0xff]
    %v89 = vld [vmem:[#allocation2 + $0x8] sm:$0xff]
    %v90 = vld [vmem:[#allocation2 + $0x10] sm:$0xff]
    %v91 = vld [vmem:[#allocation2 + $0x18] sm:$0xff]
    %v92 = vld [vmem:[#allocation2 + $0x20] sm:$0xff]
    %v93 = vld [vmem:[#allocation2 + $0x28] sm:$0xff]
    %v94 = vld [vmem:[#allocation2 + $0x30] sm:$0xff]
    %v95 = vld [vmem:[#allocation2 + $0x38] sm:$0xff]
    %v96 = vld [vmem:[#allocation2 + $0x40] sm:$0xff]
    %v97 = vld [vmem:[#allocation2 + $0x48] sm:$0xff]
    %v98 = vld [vmem:[#allocation2 + $0x50] sm:$0xff]
    %v99 = vld [vmem:[#allocation2 + $0x58] sm:$0xff]
    %v100 = vld [vmem:[#allocation2 + $0x60] sm:$0xff]
    %v101 = vld [vmem:[#allocation2 + $0x68] sm:$0xff]
    %v102 = vld [vmem:[#allocation2 + $0x70] sm:$0xff]
    %v103 = vld [vmem:[#allocation2 + $0x78] sm:$0xff]
    %v104 = vld [vmem:[#allocation2 + $0x80] sm:$0xff]
    %v105 = vld [vmem:[#allocation2 + $0x88] sm:$0xff]
    %v106 = vld [vmem:[#allocation2 + $0x90] sm:$0xff]
    %v107 = vld [vmem:[#allocation2 + $0x98] sm:$0xff]
    %v108 = vld [vmem:[#allocation2 + $0xa0] sm:$0xff]
    %v109 = vld [vmem:[#allocation2 + $0xa8] sm:$0xff]
    %v110 = vld [vmem:[#allocation2 + $0xb0] sm:$0xff]
    %v111 = vld [vmem:[#allocation2 + $0xb8] sm:$0xff]
    %v112 = vld [vmem:[#allocation2 + $0xc0] sm:$0xff]
    %v113 = vld [vmem:[#allocation2 + $0xc8] sm:$0xff]
    %v114 = vld [vmem:[#allocation2 + $0xd0] sm:$0xff]
    %v115 = vld [vmem:[#allocation2 + $0xd8] sm:$0xff]
    %v116 = vld [vmem:[#allocation2 + $0xe0] sm:$0xff]
    %v117 = vld [vmem:[#allocation2 + $0xe8] sm:$0xff]
    %v118 = vld [vmem:[#allocation2 + $0xf0] sm:$0xff]
    %v119 = vld [vmem:[#allocation2 + $0xf8] sm:$0xff]
    %v120 = vld [vmem:[#allocation2 + $0x100] sm:$0xff]
    %v121 = vld [vmem:[#allocation2 + $0x108] sm:$0xff]
    %v122 = vld [vmem:[#allocation2 + $0x110] sm:$0xff]
    %v123 = vld [vmem:[#allocation2 + $0x118] sm:$0xff]
    %v124 = vld [vmem:[#allocation2 + $0x120] sm:$0xff]
    %v125 = vld [vmem:[#allocation2 + $0x128] sm:$0xff]
    %v126 = vld [vmem:[#allocation2 + $0x130] sm:$0xff]
    %v127 = vld [vmem:[#allocation2 + $0x138] sm:$0xff]
    %v128 = vld [vmem:[#allocation2 + $0x140] sm:$0xff]
    %v129 = vld [vmem:[#allocation2 + $0x148] sm:$0xff]
    %v130 = vld [vmem:[#allocation2 + $0x150] sm:$0xff]
    %v131 = vld [vmem:[#allocation2 + $0x158] sm:$0xff]
    %v132 = vld [vmem:[#allocation2 + $0x160] sm:$0xff]
    %v133 = vld [vmem:[#allocation2 + $0x168] sm:$0xff]
    %v134 = vld [vmem:[#allocation2 + $0x170] sm:$0xff]
    %v135 = vld [vmem:[#allocation2 + $0x178] sm:$0xff]
    %v136 = vld [vmem:[#allocation2 + $0x180] sm:$0xff]
    %v137 = vld [vmem:[#allocation2 + $0x188] sm:$0xff]
    %v138 = vld [vmem:[#allocation2 + $0x190] sm:$0xff]
    %v139 = vld [vmem:[#allocation2 + $0x198] sm:$0xff]
    %v140 = vld [vmem:[#allocation2 + $0x1a0] sm:$0xff]
    %v141 = vld [vmem:[#allocation2 + $0x1a8] sm:$0xff]
    %v142 = vld [vmem:[#allocation2 + $0x1b0] sm:$0xff]
    %v143 = vld [vmem:[#allocation2 + $0x1b8] sm:$0xff]
    %v144 = vld [vmem:[#allocation2 + $0x1c0] sm:$0xff]
    %v145 = vld [vmem:[#allocation2 + $0x1c8] sm:$0xff]
    %v146 = vld [vmem:[#allocation2 + $0x1d0] sm:$0xff]
    %v147 = vld [vmem:[#allocation2 + $0x1d8] sm:$0xff]
    %v148 = vld [vmem:[#allocation2 + $0x1e0] sm:$0xff]
    %v149 = vld [vmem:[#allocation2 + $0x1e8] sm:$0xff]
    %v150 = vld [vmem:[#allocation2 + $0x1f0] sm:$0xff]
    %v151 = vld [vmem:[#allocation2 + $0x1f8] sm:$0xff]
    %v152 = vld [vmem:[#allocation2 + $0x200] sm:$0xff]
    %v153 = vld [vmem:[#allocation2 + $0x208] sm:$0xff]
    %v154 = vld [vmem:[#allocation2 + $0x210] sm:$0xff]
    %v155 = vld [vmem:[#allocation2 + $0x218] sm:$0xff]
    %v156 = vld [vmem:[#allocation2 + $0x220] sm:$0xff]
    %v157 = vld [vmem:[#allocation2 + $0x228] sm:$0xff]
    %v158 = vld [vmem:[#allocation2 + $0x230] sm:$0xff]
    %v159 = vld [vmem:[#allocation2 + $0x238] sm:$0xff]
    %v160 = vld [vmem:[#allocation2 + $0x240] sm:$0xff]
    %v161 = vld [vmem:[#allocation2 + $0x248] sm:$0xff]
    %v162 = vld [vmem:[#allocation2 + $0x250] sm:$0xff]
    %v163 = vld [vmem:[#allocation2 + $0x258] sm:$0xff]
    %v164 = vld [vmem:[#allocation2 + $0x260] sm:$0xff]
    %v165 = vld [vmem:[#allocation2 + $0x268] sm:$0xff]
    %v166 = vld [vmem:[#allocation2 + $0x270] sm:$0xff]
    %v167 = vld [vmem:[#allocation2 + $0x278] sm:$0xff]
    %v168 = vld [vmem:[#allocation2 + $0x280] sm:$0xff]
    %v169 = vld [vmem:[#allocation2 + $0x288] sm:$0xff]
    %v170 = vld [vmem:[#allocation2 + $0x290] sm:$0xff]
    %v171 = vld [vmem:[#allocation2 + $0x298] sm:$0xff]
    %v172 = vld [vmem:[#allocation2 + $0x2a0] sm:$0xff]
    %v173 = vld [vmem:[#allocation2 + $0x2a8] sm:$0xff]
    %v174 = vld [vmem:[#allocation2 + $0x2b0] sm:$0xff]
    %v175 = vld [vmem:[#allocation2 + $0x2b8] sm:$0xff]
    %v176 = vld [vmem:[#allocation2 + $0x2c0] sm:$0xff]
    %v177 = vld [vmem:[#allocation2 + $0x2c8] sm:$0xff]
    %v178 = vld [vmem:[#allocation2 + $0x2d0] sm:$0xff]
    %v179 = vld [vmem:[#allocation2 + $0x2d8] sm:$0xff]
    %v180 = vld [vmem:[#allocation2 + $0x2e0] sm:$0xff]
    %v181 = vld [vmem:[#allocation2 + $0x2e8] sm:$0xff]
    %v182 = vld [vmem:[#allocation2 + $0x2f0] sm:$0xff]
    %v183 = vld [vmem:[#allocation2 + $0x2f8] sm:$0xff]
    %v184 = vld [vmem:[#allocation2 + $0x300] sm:$0xff]
    %v185 = vld [vmem:[#allocation2 + $0x308] sm:$0xff]
    %v186 = vld [vmem:[#allocation2 + $0x310] sm:$0xff]
    %v187 = vld [vmem:[#allocation2 + $0x318] sm:$0xff]
    %v188 = vld [vmem:[#allocation2 + $0x320] sm:$0xff]
    %v189 = vld [vmem:[#allocation2 + $0x328] sm:$0xff]
    %v190 = vld [vmem:[#allocation2 + $0x330] sm:$0xff]
    %v191 = vld [vmem:[#allocation2 + $0x338] sm:$0xff]
    %v192 = vld [vmem:[#allocation2 + $0x340] sm:$0xff]
    %v193 = vld [vmem:[#allocation2 + $0x348] sm:$0xff]
    %v194 = vld [vmem:[#allocation2 + $0x350] sm:$0xff]
    %v195 = vld [vmem:[#allocation2 + $0x358] sm:$0xff]
    %v196 = vld [vmem:[#allocation2 + $0x360] sm:$0xff]
    %v197 = vld [vmem:[#allocation2 + $0x368] sm:$0xff]
    %v198 = vld [vmem:[#allocation2 + $0x370] sm:$0xff]
    %v199 = vld [vmem:[#allocation2 + $0x378] sm:$0xff]
    %v200 = vld [vmem:[#allocation2 + $0x380] sm:$0xff]
    %v201 = vld [vmem:[#allocation2 + $0x388] sm:$0xff]
    %v202 = vld [vmem:[#allocation2 + $0x390] sm:$0xff]
    %v203 = vld [vmem:[#allocation2 + $0x398] sm:$0xff]
    %v204 = vld [vmem:[#allocation2 + $0x3a0] sm:$0xff]
    %v205 = vld [vmem:[#allocation2 + $0x3a8] sm:$0xff]
    %v206 = vld [vmem:[#allocation2 + $0x3b0] sm:$0xff]
    %v207 = vld [vmem:[#allocation2 + $0x3b8] sm:$0xff]
    %v208 = vld [vmem:[#allocation2 + $0x3c0] sm:$0xff]
    %v209 = vld [vmem:[#allocation2 + $0x3c8] sm:$0xff]
    %v210 = vld [vmem:[#allocation2 + $0x3d0] sm:$0xff]
    %v211 = vld [vmem:[#allocation2 + $0x3d8] sm:$0xff]
    %v212 = vld [vmem:[#allocation2 + $0x3e0] sm:$0xff]
    %v213 = vld [vmem:[#allocation2 + $0x3e8] sm:$0xff]
    %v214 = vld [vmem:[#allocation2 + $0x3f0] sm:$0xff]
    %v215 = vld [vmem:[#allocation2 + $0x3f8] sm:$0xff]
    %v216 = vld [vmem:[#allocation2 + $0x400] sm:$0xff]
    %v217 = vld [vmem:[#allocation2 + $0x408] sm:$0xff]
    %v218 = vld [vmem:[#allocation2 + $0x410] sm:$0xff]
    %v219 = vld [vmem:[#allocation2 + $0x418] sm:$0xff]
    %v220 = vld [vmem:[#allocation2 + $0x420] sm:$0xff]
    %v221 = vld [vmem:[#allocation2 + $0x428] sm:$0xff]
    %v222 = vld [vmem:[#allocation2 + $0x430] sm:$0xff]
    %v223 = vld [vmem:[#allocation2 + $0x438] sm:$0xff]
    %v224 = vld [vmem:[#allocation2 + $0x440] sm:$0xff]
    %v225 = vld [vmem:[#allocation2 + $0x448] sm:$0xff]
    %v226 = vld [vmem:[#allocation2 + $0x450] sm:$0xff]
    %v227 = vld [vmem:[#allocation2 + $0x458] sm:$0xff]
    %v228 = vld [vmem:[#allocation2 + $0x460] sm:$0xff]
    %v229 = vld [vmem:[#allocation2 + $0x468] sm:$0xff]
    %v230 = vld [vmem:[#allocation2 + $0x470] sm:$0xff]
    %v231 = vld [vmem:[#allocation2 + $0x478] sm:$0xff]
    %v232 = vld [vmem:[#allocation2 + $0x480] sm:$0xff]
    %v233 = vld [vmem:[#allocation2 + $0x488] sm:$0xff]
    %v234 = vld [vmem:[#allocation2 + $0x490] sm:$0xff]
    %v235 = vld [vmem:[#allocation2 + $0x498] sm:$0xff]
    %v236 = vld [vmem:[#allocation2 + $0x4a0] sm:$0xff]
    %v237 = vld [vmem:[#allocation2 + $0x4a8] sm:$0xff]
    %v238 = vld [vmem:[#allocation2 + $0x4b0] sm:$0xff]
    %v239 = vld [vmem:[#allocation2 + $0x4b8] sm:$0xff]
    %v240 = vld [vmem:[#allocation2 + $0x4c0] sm:$0xff]
    %v241 = vld [vmem:[#allocation2 + $0x4c8] sm:$0xff]
    %v242 = vld [vmem:[#allocation2 + $0x4d0] sm:$0xff]
    %v243 = vld [vmem:[#allocation2 + $0x4d8] sm:$0xff]
    %v244 = vld [vmem:[#allocation2 + $0x4e0] sm:$0xff]
    %v245 = vld [vmem:[#allocation2 + $0x4e8] sm:$0xff]
    %v246 = vld [vmem:[#allocation2 + $0x4f0] sm:$0xff]
    %v247 = vld [vmem:[#allocation2 + $0x4f8] sm:$0xff]
    %v248 = vld [vmem:[#allocation2 + $0x500] sm:$0xff]
    %v249 = vld [vmem:[#allocation2 + $0x508] sm:$0xff]
    %v250 = vld [vmem:[#allocation2 + $0x510] sm:$0xff]
    %v251 = vld [vmem:[#allocation2 + $0x518] sm:$0xff]
    %v252 = vld [vmem:[#allocation2 + $0x520] sm:$0xff]
    %v253 = vld [vmem:[#allocation2 + $0x528] sm:$0xff]
    %v254 = vld [vmem:[#allocation2 + $0x530] sm:$0xff]
    %v255 = vld [vmem:[#allocation2 + $0x538] sm:$0xff]
    %v256 = vld [vmem:[#allocation2 + $0x540] sm:$0xff]
    %v257 = vld [vmem:[#allocation2 + $0x548] sm:$0xff]
    %v258 = vld [vmem:[#allocation2 + $0x550] sm:$0xff]
    %v259 = vld [vmem:[#allocation2 + $0x558] sm:$0xff]
    %v260 = vld [vmem:[#allocation2 + $0x560] sm:$0xff]
    %v261 = vld [vmem:[#allocation2 + $0x568] sm:$0xff]
    %v262 = vld [vmem:[#allocation2 + $0x570] sm:$0xff]
    %v263 = vld [vmem:[#allocation2 + $0x578] sm:$0xff]
    %v264 = vld [vmem:[#allocation2 + $0x580] sm:$0xff]
    %v265 = vld [vmem:[#allocation2 + $0x588] sm:$0xff]
    %v266 = vld [vmem:[#allocation2 + $0x590] sm:$0xff]
    %v267 = vld [vmem:[#allocation2 + $0x598] sm:$0xff]
    %v268 = vld [vmem:[#allocation2 + $0x5a0] sm:$0xff]
    %v269 = vld [vmem:[#allocation2 + $0x5a8] sm:$0xff]
    %v270 = vld [vmem:[#allocation2 + $0x5b0] sm:$0xff]
    %v271 = vld [vmem:[#allocation2 + $0x5b8] sm:$0xff]
    %v272 = vld [vmem:[#allocation2 + $0x5c0] sm:$0xff]
    %v273 = vld [vmem:[#allocation2 + $0x5c8] sm:$0xff]
    %v274 = vld [vmem:[#allocation2 + $0x5d0] sm:$0xff]
    %v275 = vld [vmem:[#allocation2 + $0x5d8] sm:$0xff]
    %v276 = vld [vmem:[#allocation2 + $0x5e0] sm:$0xff]
    %v277 = vld [vmem:[#allocation2 + $0x5e8] sm:$0xff]
    %v278 = vld [vmem:[#allocation2 + $0x5f0] sm:$0xff]
    %v279 = vld [vmem:[#allocation2 + $0x5f8] sm:$0xff]
    %v280 = vld [vmem:[%s2] sm:$0x3f]
    %v473 = vunpack.c.l.b16 %v88
    %v474 = vunpack.c.h.b16 %v88
    %v475 = vunpack.c.l.b16 %v89
    %v476 = vunpack.c.h.b16 %v89
    %v477 = vunpack.c.l.b16 %v90
    %v478 = vunpack.c.h.b16 %v90
    %v479 = vunpack.c.l.b16 %v91
    %v480 = vunpack.c.h.b16 %v91
    %v481 = vunpack.c.l.b16 %v92
    %v482 = vunpack.c.h.b16 %v92
    %v483 = vunpack.c.l.b16 %v93
    %v484 = vunpack.c.h.b16 %v93
    %v485 = vunpack.c.l.b16 %v94
    %v486 = vunpack.c.h.b16 %v94
    %v487 = vunpack.c.l.b16 %v95
    %v488 = vunpack.c.h.b16 %v95
    %v489 = vunpack.c.l.b16 %v96
    %v490 = vunpack.c.h.b16 %v96
    %v491 = vunpack.c.l.b16 %v97
    %v492 = vunpack.c.h.b16 %v97
    %v493 = vunpack.c.l.b16 %v98
    %v494 = vunpack.c.h.b16 %v98
    %v495 = vunpack.c.l.b16 %v99
    %v496 = vunpack.c.h.b16 %v99
    %v497 = vunpack.c.l.b16 %v100
    %v498 = vunpack.c.h.b16 %v100
    %v499 = vunpack.c.l.b16 %v101
    %v500 = vunpack.c.h.b16 %v101
    %v501 = vunpack.c.l.b16 %v102
    %v502 = vunpack.c.h.b16 %v102
    %v503 = vunpack.c.l.b16 %v103
    %v504 = vunpack.c.h.b16 %v103
    %v505 = vunpack.c.l.b16 %v104
    %v506 = vunpack.c.h.b16 %v104
    %v507 = vunpack.c.l.b16 %v105
    %v508 = vunpack.c.h.b16 %v105
    %v509 = vunpack.c.l.b16 %v106
    %v510 = vunpack.c.h.b16 %v106
    %v511 = vunpack.c.l.b16 %v107
    %v512 = vunpack.c.h.b16 %v107
    %v513 = vunpack.c.l.b16 %v108
    %v514 = vunpack.c.h.b16 %v108
    %v515 = vunpack.c.l.b16 %v109
    %v516 = vunpack.c.h.b16 %v109
    %v517 = vunpack.c.l.b16 %v110
    %v518 = vunpack.c.h.b16 %v110
    %v519 = vunpack.c.l.b16 %v111
    %v520 = vunpack.c.h.b16 %v111
    %v521 = vunpack.c.l.b16 %v112
    %v522 = vunpack.c.h.b16 %v112
    %v523 = vunpack.c.l.b16 %v113
    %v524 = vunpack.c.h.b16 %v113
    %v525 = vunpack.c.l.b16 %v114
    %v526 = vunpack.c.h.b16 %v114
    %v527 = vunpack.c.l.b16 %v115
    %v528 = vunpack.c.h.b16 %v115
    %v529 = vunpack.c.l.b16 %v116
    %v530 = vunpack.c.h.b16 %v116
    %v531 = vunpack.c.l.b16 %v117
    %v532 = vunpack.c.h.b16 %v117
    %v533 = vunpack.c.l.b16 %v118
    %v534 = vunpack.c.h.b16 %v118
    %v535 = vunpack.c.l.b16 %v119
    %v536 = vunpack.c.h.b16 %v119
    %v537 = vunpack.c.l.b16 %v120
    %v538 = vunpack.c.h.b16 %v120
    %v539 = vunpack.c.l.b16 %v121
    %v540 = vunpack.c.h.b16 %v121
    %v541 = vunpack.c.l.b16 %v122
    %v542 = vunpack.c.h.b16 %v122
    %v543 = vunpack.c.l.b16 %v123
    %v544 = vunpack.c.h.b16 %v123
    %v545 = vunpack.c.l.b16 %v124
    %v546 = vunpack.c.h.b16 %v124
    %v547 = vunpack.c.l.b16 %v125
    %v548 = vunpack.c.h.b16 %v125
    %v549 = vunpack.c.l.b16 %v126
    %v550 = vunpack.c.h.b16 %v126
    %v551 = vunpack.c.l.b16 %v127
    %v552 = vunpack.c.h.b16 %v127
    %v553 = vunpack.c.l.b16 %v128
    %v554 = vunpack.c.h.b16 %v128
    %v555 = vunpack.c.l.b16 %v129
    %v556 = vunpack.c.h.b16 %v129
    %v557 = vunpack.c.l.b16 %v130
    %v558 = vunpack.c.h.b16 %v130
    %v559 = vunpack.c.l.b16 %v131
    %v560 = vunpack.c.h.b16 %v131
    %v561 = vunpack.c.l.b16 %v132
    %v562 = vunpack.c.h.b16 %v132
    %v563 = vunpack.c.l.b16 %v133
    %v564 = vunpack.c.h.b16 %v133
    %v565 = vunpack.c.l.b16 %v134
    %v566 = vunpack.c.h.b16 %v134
    %v567 = vunpack.c.l.b16 %v135
    %v568 = vunpack.c.h.b16 %v135
    %v569 = vunpack.c.l.b16 %v136
    %v570 = vunpack.c.h.b16 %v136
    %v571 = vunpack.c.l.b16 %v137
    %v572 = vunpack.c.h.b16 %v137
    %v573 = vunpack.c.l.b16 %v138
    %v574 = vunpack.c.h.b16 %v138
    %v575 = vunpack.c.l.b16 %v139
    %v576 = vunpack.c.h.b16 %v139
    %v577 = vunpack.c.l.b16 %v140
    %v578 = vunpack.c.h.b16 %v140
    %v579 = vunpack.c.l.b16 %v141
    %v580 = vunpack.c.h.b16 %v141
    %v581 = vunpack.c.l.b16 %v142
    %v582 = vunpack.c.h.b16 %v142
    %v583 = vunpack.c.l.b16 %v143
    %v584 = vunpack.c.h.b16 %v143
    %v585 = vunpack.c.l.b16 %v144
    %v586 = vunpack.c.h.b16 %v144
    %v587 = vunpack.c.l.b16 %v145
    %v588 = vunpack.c.h.b16 %v145
    %v589 = vunpack.c.l.b16 %v146
    %v590 = vunpack.c.h.b16 %v146
    %v591 = vunpack.c.l.b16 %v147
    %v592 = vunpack.c.h.b16 %v147
    %v593 = vunpack.c.l.b16 %v148
    %v594 = vunpack.c.h.b16 %v148
    %v595 = vunpack.c.l.b16 %v149
    %v596 = vunpack.c.h.b16 %v149
    %v597 = vunpack.c.l.b16 %v150
    %v598 = vunpack.c.h.b16 %v150
    %v599 = vunpack.c.l.b16 %v151
    %v600 = vunpack.c.h.b16 %v151
    %v601 = vunpack.c.l.b16 %v152
    %v602 = vunpack.c.h.b16 %v152
    %v603 = vunpack.c.l.b16 %v153
    %v604 = vunpack.c.h.b16 %v153
    %v605 = vunpack.c.l.b16 %v154
    %v606 = vunpack.c.h.b16 %v154
    %v607 = vunpack.c.l.b16 %v155
    %v608 = vunpack.c.h.b16 %v155
    %v609 = vunpack.c.l.b16 %v156
    %v610 = vunpack.c.h.b16 %v156
    %v611 = vunpack.c.l.b16 %v157
    %v612 = vunpack.c.h.b16 %v157
    %v613 = vunpack.c.l.b16 %v158
    %v614 = vunpack.c.h.b16 %v158
    %v615 = vunpack.c.l.b16 %v159
    %v616 = vunpack.c.h.b16 %v159
    %v617 = vunpack.c.l.b16 %v160
    %v618 = vunpack.c.h.b16 %v160
    %v619 = vunpack.c.l.b16 %v161
    %v620 = vunpack.c.h.b16 %v161
    %v621 = vunpack.c.l.b16 %v162
    %v622 = vunpack.c.h.b16 %v162
    %v623 = vunpack.c.l.b16 %v163
    %v624 = vunpack.c.h.b16 %v163
    %v625 = vunpack.c.l.b16 %v164
    %v626 = vunpack.c.h.b16 %v164
    %v627 = vunpack.c.l.b16 %v165
    %v628 = vunpack.c.h.b16 %v165
    %v629 = vunpack.c.l.b16 %v166
    %v630 = vunpack.c.h.b16 %v166
    %v631 = vunpack.c.l.b16 %v167
    %v632 = vunpack.c.h.b16 %v167
    %v633 = vunpack.c.l.b16 %v168
    %v634 = vunpack.c.h.b16 %v168
    %v635 = vunpack.c.l.b16 %v169
    %v636 = vunpack.c.h.b16 %v169
    %v637 = vunpack.c.l.b16 %v170
    %v638 = vunpack.c.h.b16 %v170
    %v639 = vunpack.c.l.b16 %v171
    %v640 = vunpack.c.h.b16 %v171
    %v641 = vunpack.c.l.b16 %v172
    %v642 = vunpack.c.h.b16 %v172
    %v643 = vunpack.c.l.b16 %v173
    %v644 = vunpack.c.h.b16 %v173
    %v645 = vunpack.c.l.b16 %v174
    %v646 = vunpack.c.h.b16 %v174
    %v647 = vunpack.c.l.b16 %v175
    %v648 = vunpack.c.h.b16 %v175
    %v649 = vunpack.c.l.b16 %v176
    %v650 = vunpack.c.h.b16 %v176
    %v651 = vunpack.c.l.b16 %v177
    %v652 = vunpack.c.h.b16 %v177
    %v653 = vunpack.c.l.b16 %v178
    %v654 = vunpack.c.h.b16 %v178
    %v655 = vunpack.c.l.b16 %v179
    %v656 = vunpack.c.h.b16 %v179
    %v657 = vunpack.c.l.b16 %v180
    %v658 = vunpack.c.h.b16 %v180
    %v659 = vunpack.c.l.b16 %v181
    %v660 = vunpack.c.h.b16 %v181
    %v661 = vunpack.c.l.b16 %v182
    %v662 = vunpack.c.h.b16 %v182
    %v663 = vunpack.c.l.b16 %v183
    %v664 = vunpack.c.h.b16 %v183
    %v665 = vunpack.c.l.b16 %v184
    %v666 = vunpack.c.h.b16 %v184
    %v667 = vunpack.c.l.b16 %v185
    %v668 = vunpack.c.h.b16 %v185
    %v669 = vunpack.c.l.b16 %v186
    %v670 = vunpack.c.h.b16 %v186
    %v671 = vunpack.c.l.b16 %v187
    %v672 = vunpack.c.h.b16 %v187
    %v673 = vunpack.c.l.b16 %v188
    %v674 = vunpack.c.h.b16 %v188
    %v675 = vunpack.c.l.b16 %v189
    %v676 = vunpack.c.h.b16 %v189
    %v677 = vunpack.c.l.b16 %v190
    %v678 = vunpack.c.h.b16 %v190
    %v679 = vunpack.c.l.b16 %v191
    %v680 = vunpack.c.h.b16 %v191
    %v681 = vunpack.c.l.b16 %v192
    %v682 = vunpack.c.h.b16 %v192
    %v683 = vunpack.c.l.b16 %v193
    %v684 = vunpack.c.h.b16 %v193
    %v685 = vunpack.c.l.b16 %v194
    %v686 = vunpack.c.h.b16 %v194
    %v687 = vunpack.c.l.b16 %v195
    %v688 = vunpack.c.h.b16 %v195
    %v689 = vunpack.c.l.b16 %v196
    %v690 = vunpack.c.h.b16 %v196
    %v691 = vunpack.c.l.b16 %v197
    %v692 = vunpack.c.h.b16 %v197
    %v693 = vunpack.c.l.b16 %v198
    %v694 = vunpack.c.h.b16 %v198
    %v695 = vunpack.c.l.b16 %v199
    %v696 = vunpack.c.h.b16 %v199
    %v697 = vunpack.c.l.b16 %v200
    %v698 = vunpack.c.h.b16 %v200
    %v699 = vunpack.c.l.b16 %v201
    %v700 = vunpack.c.h.b16 %v201
    %v701 = vunpack.c.l.b16 %v202
    %v702 = vunpack.c.h.b16 %v202
    %v703 = vunpack.c.l.b16 %v203
    %v704 = vunpack.c.h.b16 %v203
    %v705 = vunpack.c.l.b16 %v204
    %v706 = vunpack.c.h.b16 %v204
    %v707 = vunpack.c.l.b16 %v205
    %v708 = vunpack.c.h.b16 %v205
    %v709 = vunpack.c.l.b16 %v206
    %v710 = vunpack.c.h.b16 %v206
    %v711 = vunpack.c.l.b16 %v207
    %v712 = vunpack.c.h.b16 %v207
    %v713 = vunpack.c.l.b16 %v208
    %v714 = vunpack.c.h.b16 %v208
    %v715 = vunpack.c.l.b16 %v209
    %v716 = vunpack.c.h.b16 %v209
    %v717 = vunpack.c.l.b16 %v210
    %v718 = vunpack.c.h.b16 %v210
    %v719 = vunpack.c.l.b16 %v211
    %v720 = vunpack.c.h.b16 %v211
    %v721 = vunpack.c.l.b16 %v212
    %v722 = vunpack.c.h.b16 %v212
    %v723 = vunpack.c.l.b16 %v213
    %v724 = vunpack.c.h.b16 %v213
    %v725 = vunpack.c.l.b16 %v214
    %v726 = vunpack.c.h.b16 %v214
    %v727 = vunpack.c.l.b16 %v215
    %v728 = vunpack.c.h.b16 %v215
    %v729 = vunpack.c.l.b16 %v216
    %v730 = vunpack.c.h.b16 %v216
    %v731 = vunpack.c.l.b16 %v217
    %v732 = vunpack.c.h.b16 %v217
    %v733 = vunpack.c.l.b16 %v218
    %v734 = vunpack.c.h.b16 %v218
    %v735 = vunpack.c.l.b16 %v219
    %v736 = vunpack.c.h.b16 %v219
    %v737 = vunpack.c.l.b16 %v220
    %v738 = vunpack.c.h.b16 %v220
    %v739 = vunpack.c.l.b16 %v221
    %v740 = vunpack.c.h.b16 %v221
    %v741 = vunpack.c.l.b16 %v222
    %v742 = vunpack.c.h.b16 %v222
    %v743 = vunpack.c.l.b16 %v223
    %v744 = vunpack.c.h.b16 %v223
    %v745 = vunpack.c.l.b16 %v224
    %v746 = vunpack.c.h.b16 %v224
    %v747 = vunpack.c.l.b16 %v225
    %v748 = vunpack.c.h.b16 %v225
    %v749 = vunpack.c.l.b16 %v226
    %v750 = vunpack.c.h.b16 %v226
    %v751 = vunpack.c.l.b16 %v227
    %v752 = vunpack.c.h.b16 %v227
    %v753 = vunpack.c.l.b16 %v228
    %v754 = vunpack.c.h.b16 %v228
    %v755 = vunpack.c.l.b16 %v229
    %v756 = vunpack.c.h.b16 %v229
    %v757 = vunpack.c.l.b16 %v230
    %v758 = vunpack.c.h.b16 %v230
    %v759 = vunpack.c.l.b16 %v231
    %v760 = vunpack.c.h.b16 %v231
    %v761 = vunpack.c.l.b16 %v232
    %v762 = vunpack.c.h.b16 %v232
    %v763 = vunpack.c.l.b16 %v233
    %v764 = vunpack.c.h.b16 %v233
    %v765 = vunpack.c.l.b16 %v234
    %v766 = vunpack.c.h.b16 %v234
    %v767 = vunpack.c.l.b16 %v235
    %v768 = vunpack.c.h.b16 %v235
    %v769 = vunpack.c.l.b16 %v236
    %v770 = vunpack.c.h.b16 %v236
    %v771 = vunpack.c.l.b16 %v237
    %v772 = vunpack.c.h.b16 %v237
    %v773 = vunpack.c.l.b16 %v238
    %v774 = vunpack.c.h.b16 %v238
    %v775 = vunpack.c.l.b16 %v239
    %v776 = vunpack.c.h.b16 %v239
    %v777 = vunpack.c.l.b16 %v240
    %v778 = vunpack.c.h.b16 %v240
    %v779 = vunpack.c.l.b16 %v241
    %v780 = vunpack.c.h.b16 %v241
    %v781 = vunpack.c.l.b16 %v242
    %v782 = vunpack.c.h.b16 %v242
    %v783 = vunpack.c.l.b16 %v243
    %v784 = vunpack.c.h.b16 %v243
    %v785 = vunpack.c.l.b16 %v244
    %v786 = vunpack.c.h.b16 %v244
    %v787 = vunpack.c.l.b16 %v245
    %v788 = vunpack.c.h.b16 %v245
    %v789 = vunpack.c.l.b16 %v246
    %v790 = vunpack.c.h.b16 %v246
    %v791 = vunpack.c.l.b16 %v247
    %v792 = vunpack.c.h.b16 %v247
    %v793 = vunpack.c.l.b16 %v248
    %v794 = vunpack.c.h.b16 %v248
    %v795 = vunpack.c.l.b16 %v249
    %v796 = vunpack.c.h.b16 %v249
    %v797 = vunpack.c.l.b16 %v250
    %v798 = vunpack.c.h.b16 %v250
    %v799 = vunpack.c.l.b16 %v251
    %v800 = vunpack.c.h.b16 %v251
    %v801 = vunpack.c.l.b16 %v252
    %v802 = vunpack.c.h.b16 %v252
    %v803 = vunpack.c.l.b16 %v253
    %v804 = vunpack.c.h.b16 %v253
    %v805 = vunpack.c.l.b16 %v254
    %v806 = vunpack.c.h.b16 %v254
    %v807 = vunpack.c.l.b16 %v255
    %v808 = vunpack.c.h.b16 %v255
    %v809 = vunpack.c.l.b16 %v256
    %v810 = vunpack.c.h.b16 %v256
    %v811 = vunpack.c.l.b16 %v257
    %v812 = vunpack.c.h.b16 %v257
    %v813 = vunpack.c.l.b16 %v258
    %v814 = vunpack.c.h.b16 %v258
    %v815 = vunpack.c.l.b16 %v259
    %v816 = vunpack.c.h.b16 %v259
    %v817 = vunpack.c.l.b16 %v260
    %v818 = vunpack.c.h.b16 %v260
    %v819 = vunpack.c.l.b16 %v261
    %v820 = vunpack.c.h.b16 %v261
    %v821 = vunpack.c.l.b16 %v262
    %v822 = vunpack.c.h.b16 %v262
    %v823 = vunpack.c.l.b16 %v263
    %v824 = vunpack.c.h.b16 %v263
    %v825 = vunpack.c.l.b16 %v264
    %v826 = vunpack.c.h.b16 %v264
    %v827 = vunpack.c.l.b16 %v265
    %v828 = vunpack.c.h.b16 %v265
    %v829 = vunpack.c.l.b16 %v266
    %v830 = vunpack.c.h.b16 %v266
    %v831 = vunpack.c.l.b16 %v267
    %v832 = vunpack.c.h.b16 %v267
    %v833 = vunpack.c.l.b16 %v268
    %v834 = vunpack.c.h.b16 %v268
    %v835 = vunpack.c.l.b16 %v269
    %v836 = vunpack.c.h.b16 %v269
    %v837 = vunpack.c.l.b16 %v270
    %v838 = vunpack.c.h.b16 %v270
    %v839 = vunpack.c.l.b16 %v271
    %v840 = vunpack.c.h.b16 %v271
    %v841 = vunpack.c.l.b16 %v272
    %v842 = vunpack.c.h.b16 %v272
    %v843 = vunpack.c.l.b16 %v273
    %v844 = vunpack.c.h.b16 %v273
    %v845 = vunpack.c.l.b16 %v274
    %v846 = vunpack.c.h.b16 %v274
    %v847 = vunpack.c.l.b16 %v275
    %v848 = vunpack.c.h.b16 %v275
    %v849 = vunpack.c.l.b16 %v276
    %v850 = vunpack.c.h.b16 %v276
    %v851 = vunpack.c.l.b16 %v277
    %v852 = vunpack.c.h.b16 %v277
    %v853 = vunpack.c.l.b16 %v278
    %v854 = vunpack.c.h.b16 %v278
    %v855 = vunpack.c.l.b16 %v279
    %v856 = vunpack.c.h.b16 %v279
    %v857 = vpack.c.b16 %v479, %v473
    %v858 = vpack.c.b16 %v480, %v474
    %v859 = vpack.c.b16 %v481, %v475
    %v860 = vpack.c.b16 %v482, %v476
    %v861 = vpack.c.b16 %v483, %v477
    %v862 = vpack.c.b16 %v484, %v478
    %v863 = vpack.c.b16 %v491, %v485
    %v864 = vpack.c.b16 %v492, %v486
    %v865 = vpack.c.b16 %v493, %v487
    %v866 = vpack.c.b16 %v494, %v488
    %v867 = vpack.c.b16 %v495, %v489
    %v868 = vpack.c.b16 %v496, %v490
    %v869 = vpack.c.b16 %v503, %v497
    %v870 = vpack.c.b16 %v504, %v498
    %v871 = vpack.c.b16 %v505, %v499
    %v872 = vpack.c.b16 %v506, %v500
    %v873 = vpack.c.b16 %v507, %v501
    %v874 = vpack.c.b16 %v508, %v502
    %v875 = vpack.c.b16 %v515, %v509
    %v876 = vpack.c.b16 %v516, %v510
    %v877 = vpack.c.b16 %v517, %v511
    %v878 = vpack.c.b16 %v518, %v512
    %v879 = vpack.c.b16 %v519, %v513
    %v880 = vpack.c.b16 %v520, %v514
    %v881 = vpack.c.b16 %v527, %v521
    %v882 = vpack.c.b16 %v528, %v522
    %v883 = vpack.c.b16 %v529, %v523
    %v884 = vpack.c.b16 %v530, %v524
    %v885 = vpack.c.b16 %v531, %v525
    %v886 = vpack.c.b16 %v532, %v526
    %v887 = vpack.c.b16 %v539, %v533
    %v888 = vpack.c.b16 %v540, %v534
    %v889 = vpack.c.b16 %v541, %v535
    %v890 = vpack.c.b16 %v542, %v536
    %v891 = vpack.c.b16 %v543, %v537
    %v892 = vpack.c.b16 %v544, %v538
    %v893 = vpack.c.b16 %v551, %v545
    %v894 = vpack.c.b16 %v552, %v546
    %v895 = vpack.c.b16 %v553, %v547
    %v896 = vpack.c.b16 %v554, %v548
    %v897 = vpack.c.b16 %v555, %v549
    %v898 = vpack.c.b16 %v556, %v550
    %v899 = vpack.c.b16 %v563, %v557
    %v900 = vpack.c.b16 %v564, %v558
    %v901 = vpack.c.b16 %v565, %v559
    %v902 = vpack.c.b16 %v566, %v560
    %v903 = vpack.c.b16 %v567, %v561
    %v904 = vpack.c.b16 %v568, %v562
    %v905 = vpack.c.b16 %v575, %v569
    %v906 = vpack.c.b16 %v576, %v570
    %v907 = vpack.c.b16 %v577, %v571
    %v908 = vpack.c.b16 %v578, %v572
    %v909 = vpack.c.b16 %v579, %v573
    %v910 = vpack.c.b16 %v580, %v574
    %v911 = vpack.c.b16 %v587, %v581
    %v912 = vpack.c.b16 %v588, %v582
    %v913 = vpack.c.b16 %v589, %v583
    %v914 = vpack.c.b16 %v590, %v584
    %v915 = vpack.c.b16 %v591, %v585
    %v916 = vpack.c.b16 %v592, %v586
    %v917 = vpack.c.b16 %v599, %v593
    %v918 = vpack.c.b16 %v600, %v594
    %v919 = vpack.c.b16 %v601, %v595
    %v920 = vpack.c.b16 %v602, %v596
    %v921 = vpack.c.b16 %v603, %v597
    %v922 = vpack.c.b16 %v604, %v598
    %v923 = vpack.c.b16 %v611, %v605
    %v924 = vpack.c.b16 %v612, %v606
    %v925 = vpack.c.b16 %v613, %v607
    %v926 = vpack.c.b16 %v614, %v608
    %v927 = vpack.c.b16 %v615, %v609
    %v928 = vpack.c.b16 %v616, %v610
    %v929 = vpack.c.b16 %v623, %v617
    %v930 = vpack.c.b16 %v624, %v618
    %v931 = vpack.c.b16 %v625, %v619
    %v932 = vpack.c.b16 %v626, %v620
    %v933 = vpack.c.b16 %v627, %v621
    %v934 = vpack.c.b16 %v628, %v622
    %v935 = vpack.c.b16 %v635, %v629
    %v936 = vpack.c.b16 %v636, %v630
    %v937 = vpack.c.b16 %v637, %v631
    %v938 = vpack.c.b16 %v638, %v632
    %v939 = vpack.c.b16 %v639, %v633
    %v940 = vpack.c.b16 %v640, %v634
    %v941 = vpack.c.b16 %v647, %v641
    %v942 = vpack.c.b16 %v648, %v642
    %v943 = vpack.c.b16 %v649, %v643
    %v944 = vpack.c.b16 %v650, %v644
    %v945 = vpack.c.b16 %v651, %v645
    %v946 = vpack.c.b16 %v652, %v646
    %v947 = vpack.c.b16 %v659, %v653
    %v948 = vpack.c.b16 %v660, %v654
    %v949 = vpack.c.b16 %v661, %v655
    %v950 = vpack.c.b16 %v662, %v656
    %v951 = vpack.c.b16 %v663, %v657
    %v952 = vpack.c.b16 %v664, %v658
    %v953 = vpack.c.b16 %v671, %v665
    %v954 = vpack.c.b16 %v672, %v666
    %v955 = vpack.c.b16 %v673, %v667
    %v956 = vpack.c.b16 %v674, %v668
    %v957 = vpack.c.b16 %v675, %v669
    %v958 = vpack.c.b16 %v676, %v670
    %v959 = vpack.c.b16 %v683, %v677
    %v960 = vpack.c.b16 %v684, %v678
    %v961 = vpack.c.b16 %v685, %v679
    %v962 = vpack.c.b16 %v686, %v680
    %v963 = vpack.c.b16 %v687, %v681
    %v964 = vpack.c.b16 %v688, %v682
    %v965 = vpack.c.b16 %v695, %v689
    %v966 = vpack.c.b16 %v696, %v690
    %v967 = vpack.c.b16 %v697, %v691
    %v968 = vpack.c.b16 %v698, %v692
    %v969 = vpack.c.b16 %v699, %v693
    %v970 = vpack.c.b16 %v700, %v694
    %v971 = vpack.c.b16 %v707, %v701
    %v972 = vpack.c.b16 %v708, %v702
    %v973 = vpack.c.b16 %v709, %v703
    %v974 = vpack.c.b16 %v710, %v704
    %v975 = vpack.c.b16 %v711, %v705
    %v976 = vpack.c.b16 %v712, %v706
    %v977 = vpack.c.b16 %v719, %v713
    %v978 = vpack.c.b16 %v720, %v714
    %v979 = vpack.c.b16 %v721, %v715
    %v980 = vpack.c.b16 %v722, %v716
    %v981 = vpack.c.b16 %v723, %v717
    %v982 = vpack.c.b16 %v724, %v718
    %v983 = vpack.c.b16 %v731, %v725
    %v984 = vpack.c.b16 %v732, %v726
    %v985 = vpack.c.b16 %v733, %v727
    %v986 = vpack.c.b16 %v734, %v728
    %v987 = vpack.c.b16 %v735, %v729
    %v988 = vpack.c.b16 %v736, %v730
    %v989 = vpack.c.b16 %v743, %v737
    %v990 = vpack.c.b16 %v744, %v738
    %v991 = vpack.c.b16 %v745, %v739
    %v992 = vpack.c.b16 %v746, %v740
    %v993 = vpack.c.b16 %v747, %v741
    %v994 = vpack.c.b16 %v748, %v742
    %v995 = vpack.c.b16 %v755, %v749
    %v996 = vpack.c.b16 %v756, %v750
    %v997 = vpack.c.b16 %v757, %v751
    %v998 = vpack.c.b16 %v758, %v752
    %v999 = vpack.c.b16 %v759, %v753
    %v1000 = vpack.c.b16 %v760, %v754
    %v1001 = vpack.c.b16 %v767, %v761
    %v1002 = vpack.c.b16 %v768, %v762
    %v1003 = vpack.c.b16 %v769, %v763
    %v1004 = vpack.c.b16 %v770, %v764
    %v1005 = vpack.c.b16 %v771, %v765
    %v1006 = vpack.c.b16 %v772, %v766
    %v1007 = vpack.c.b16 %v779, %v773
    %v1008 = vpack.c.b16 %v780, %v774
    %v1009 = vpack.c.b16 %v781, %v775
    %v1010 = vpack.c.b16 %v782, %v776
    %v1011 = vpack.c.b16 %v783, %v777
    %v1012 = vpack.c.b16 %v784, %v778
    %v1013 = vpack.c.b16 %v791, %v785
    %v1014 = vpack.c.b16 %v792, %v786
    %v1015 = vpack.c.b16 %v793, %v787
    %v1016 = vpack.c.b16 %v794, %v788
    %v1017 = vpack.c.b16 %v795, %v789
    %v1018 = vpack.c.b16 %v796, %v790
    %v1019 = vpack.c.b16 %v803, %v797
    %v1020 = vpack.c.b16 %v804, %v798
    %v1021 = vpack.c.b16 %v805, %v799
    %v1022 = vpack.c.b16 %v806, %v800
    %v1023 = vpack.c.b16 %v807, %v801
    %v1024 = vpack.c.b16 %v808, %v802
    %v1025 = vpack.c.b16 %v815, %v809
    %v1026 = vpack.c.b16 %v816, %v810
    %v1027 = vpack.c.b16 %v817, %v811
    %v1028 = vpack.c.b16 %v818, %v812
    %v1029 = vpack.c.b16 %v819, %v813
    %v1030 = vpack.c.b16 %v820, %v814
    %v1031 = vpack.c.b16 %v827, %v821
    %v1032 = vpack.c.b16 %v828, %v822
    %v1033 = vpack.c.b16 %v829, %v823
    %v1034 = vpack.c.b16 %v830, %v824
    %v1035 = vpack.c.b16 %v831, %v825
    %v1036 = vpack.c.b16 %v832, %v826
    %v1037 = vpack.c.b16 %v839, %v833
    %v1038 = vpack.c.b16 %v840, %v834
    %v1039 = vpack.c.b16 %v841, %v835
    %v1040 = vpack.c.b16 %v842, %v836
    %v1041 = vpack.c.b16 %v843, %v837
    %v1042 = vpack.c.b16 %v844, %v838
    %v1043 = vpack.c.b16 %v851, %v845
    %v1044 = vpack.c.b16 %v852, %v846
    %v1045 = vpack.c.b16 %v853, %v847
    %v1046 = vpack.c.b16 %v854, %v848
    %v1047 = vpack.c.b16 %v855, %v849
    %v1048 = vpack.c.b16 %v856, %v850
    %v1242 = vperm.slane %v280, 0
    %v1243 = vperm.slane %v280, 1
    %v1244 = vperm.slane %v280, 2
    %v1245 = vperm.slane %v280, 3
    %v1246 = vperm.slane %v280, 4
    %v1247 = vperm.slane %v280, 5
    %1254 = vmatpush.bf16.msra.mxu0 %v899
    %1255 = vmatpush.bf16.msra.mxu0 %v893
    %1256 = vmatpush.bf16.msra.mxu0 %v887
    %1257 = vmatpush.bf16.msra.mxu0 %v881
    %1258 = vmatpush.bf16.msra.mxu0 %v875
    %1259 = vmatpush.bf16.msra.mxu0 %v869
    %1260 = vmatpush.bf16.msra.mxu0 %v863
    %1261 = vmatpush.bf16.msra.mxu0 %v857
    %1262 = vmatmul.bf16.gmra.mxu0 %v84
    %v1263 = vpop.f32.mrf.mxu0
    %v1264 = vadd.f32 %v1242, %v1263
    %v1265 = vpop.f32.mrf.mxu0
    %1266 = vdwg.mxu0
    %1267 = vmatpush.bf16.msra.mxu0 %v947
    %1268 = vmatpush.bf16.msra.mxu0 %v941
    %1269 = vmatpush.bf16.msra.mxu0 %v935
    %1270 = vmatpush.bf16.msra.mxu0 %v929
    %1271 = vmatpush.bf16.msra.mxu0 %v923
    %1272 = vmatpush.bf16.msra.mxu0 %v917
    %1273 = vmatpush.bf16.msra.mxu0 %v911
    %1274 = vmatpush.bf16.msra.mxu0 %v905
    %1275 = vmatmul.bf16.gmra.mxu0 %v85
    %v1276 = vpop.f32.mrf.mxu0
    %v1277 = vadd.f32 %v1264, %v1276
    %v1278 = vpop.f32.mrf.mxu0
    %1279 = vdwg.mxu0
    %1280 = vmatpush.bf16.msra.mxu0 %v995
    %1281 = vmatpush.bf16.msra.mxu0 %v989
    %1282 = vmatpush.bf16.msra.mxu0 %v983
    %1283 = vmatpush.bf16.msra.mxu0 %v977
    %1284 = vmatpush.bf16.msra.mxu0 %v971
    %1285 = vmatpush.bf16.msra.mxu0 %v965
    %1286 = vmatpush.bf16.msra.mxu0 %v959
    %1287 = vmatpush.bf16.msra.mxu0 %v953
    %1288 = vmatmul.bf16.gmra.mxu0 %v86
    %v1289 = vpop.f32.mrf.mxu0
    %v1290 = vadd.f32 %v1277, %v1289
    %v1291 = vpop.f32.mrf.mxu0
    %1292 = vdwg.mxu0
    %1293 = vmatpush.bf16.msra.mxu0 %v1043
    %1294 = vmatpush.bf16.msra.mxu0 %v1037
    %1295 = vmatpush.bf16.msra.mxu0 %v1031
    %1296 = vmatpush.bf16.msra.mxu0 %v1025
    %1297 = vmatpush.bf16.msra.mxu0 %v1019
    %1298 = vmatpush.bf16.msra.mxu0 %v1013
    %1299 = vmatpush.bf16.msra.mxu0 %v1007
    %1300 = vmatpush.bf16.msra.mxu0 %v1001
    %1301 = vmatmul.bf16.gmra.mxu0 %v87
    %v1302 = vpop.f32.mrf.mxu0
    %v1303 = vadd.f32 %v1290, %v1302
    %v1304 = vpop.f32.mrf.mxu0
    %1305 = vdwg.mxu0
    %1306 = vmatpush.bf16.msra.mxu0 %v900
    %1307 = vmatpush.bf16.msra.mxu0 %v894
    %1308 = vmatpush.bf16.msra.mxu0 %v888
    %1309 = vmatpush.bf16.msra.mxu0 %v882
    %1310 = vmatpush.bf16.msra.mxu0 %v876
    %1311 = vmatpush.bf16.msra.mxu0 %v870
    %1312 = vmatpush.bf16.msra.mxu0 %v864
    %1313 = vmatpush.bf16.msra.mxu0 %v858
    %1314 = vmatmul.bf16.gmra.mxu0 %v84
    %v1315 = vpop.f32.mrf.mxu0
    %v1316 = vadd.f32 %v1243, %v1315
    %v1317 = vpop.f32.mrf.mxu0
    %1318 = vdwg.mxu0
    %1319 = vmatpush.bf16.msra.mxu0 %v948
    %1320 = vmatpush.bf16.msra.mxu0 %v942
    %1321 = vmatpush.bf16.msra.mxu0 %v936
    %1322 = vmatpush.bf16.msra.mxu0 %v930
    %1323 = vmatpush.bf16.msra.mxu0 %v924
    %1324 = vmatpush.bf16.msra.mxu0 %v918
    %1325 = vmatpush.bf16.msra.mxu0 %v912
    %1326 = vmatpush.bf16.msra.mxu0 %v906
    %1327 = vmatmul.bf16.gmra.mxu0 %v85
    %v1328 = vpop.f32.mrf.mxu0
    %v1329 = vadd.f32 %v1316, %v1328
    %v1330 = vpop.f32.mrf.mxu0
    %1331 = vdwg.mxu0
    %1332 = vmatpush.bf16.msra.mxu0 %v996
    %1333 = vmatpush.bf16.msra.mxu0 %v990
    %1334 = vmatpush.bf16.msra.mxu0 %v984
    %1335 = vmatpush.bf16.msra.mxu0 %v978
    %1336 = vmatpush.bf16.msra.mxu0 %v972
    %1337 = vmatpush.bf16.msra.mxu0 %v966
    %1338 = vmatpush.bf16.msra.mxu0 %v960
    %1339 = vmatpush.bf16.msra.mxu0 %v954
    %1340 = vmatmul.bf16.gmra.mxu0 %v86
    %v1341 = vpop.f32.mrf.mxu0
    %v1342 = vadd.f32 %v1329, %v1341
    %v1343 = vpop.f32.mrf.mxu0
    %1344 = vdwg.mxu0
    %1345 = vmatpush.bf16.msra.mxu0 %v1044
    %1346 = vmatpush.bf16.msra.mxu0 %v1038
    %1347 = vmatpush.bf16.msra.mxu0 %v1032
    %1348 = vmatpush.bf16.msra.mxu0 %v1026
    %1349 = vmatpush.bf16.msra.mxu0 %v1020
    %1350 = vmatpush.bf16.msra.mxu0 %v1014
    %1351 = vmatpush.bf16.msra.mxu0 %v1008
    %1352 = vmatpush.bf16.msra.mxu0 %v1002
    %1353 = vmatmul.bf16.gmra.mxu0 %v87
    %v1354 = vpop.f32.mrf.mxu0
    %v1355 = vadd.f32 %v1342, %v1354
    %v1356 = vpop.f32.mrf.mxu0
    %1357 = vdwg.mxu0
    %1358 = vmatpush.bf16.msra.mxu0 %v901
    %1359 = vmatpush.bf16.msra.mxu0 %v895
    %1360 = vmatpush.bf16.msra.mxu0 %v889
    %1361 = vmatpush.bf16.msra.mxu0 %v883
    %1362 = vmatpush.bf16.msra.mxu0 %v877
    %1363 = vmatpush.bf16.msra.mxu0 %v871
    %1364 = vmatpush.bf16.msra.mxu0 %v865
    %1365 = vmatpush.bf16.msra.mxu0 %v859
    %1366 = vmatmul.bf16.gmra.mxu0 %v84
    %v1367 = vpop.f32.mrf.mxu0
    %v1368 = vadd.f32 %v1244, %v1367
    %v1369 = vpop.f32.mrf.mxu0
    %1370 = vdwg.mxu0
    %1371 = vmatpush.bf16.msra.mxu0 %v949
    %1372 = vmatpush.bf16.msra.mxu0 %v943
    %1373 = vmatpush.bf16.msra.mxu0 %v937
    %1374 = vmatpush.bf16.msra.mxu0 %v931
    %1375 = vmatpush.bf16.msra.mxu0 %v925
    %1376 = vmatpush.bf16.msra.mxu0 %v919
    %1377 = vmatpush.bf16.msra.mxu0 %v913
    %1378 = vmatpush.bf16.msra.mxu0 %v907
    %1379 = vmatmul.bf16.gmra.mxu0 %v85
    %v1380 = vpop.f32.mrf.mxu0
    %v1381 = vadd.f32 %v1368, %v1380
    %v1382 = vpop.f32.mrf.mxu0
    %1383 = vdwg.mxu0
    %1384 = vmatpush.bf16.msra.mxu0 %v997
    %1385 = vmatpush.bf16.msra.mxu0 %v991
    %1386 = vmatpush.bf16.msra.mxu0 %v985
    %1387 = vmatpush.bf16.msra.mxu0 %v979
    %1388 = vmatpush.bf16.msra.mxu0 %v973
    %1389 = vmatpush.bf16.msra.mxu0 %v967
    %1390 = vmatpush.bf16.msra.mxu0 %v961
    %1391 = vmatpush.bf16.msra.mxu0 %v955
    %1392 = vmatmul.bf16.gmra.mxu0 %v86
    %v1393 = vpop.f32.mrf.mxu0
    %v1394 = vadd.f32 %v1381, %v1393
    %v1395 = vpop.f32.mrf.mxu0
    %1396 = vdwg.mxu0
    %1397 = vmatpush.bf16.msra.mxu0 %v1045
    %1398 = vmatpush.bf16.msra.mxu0 %v1039
    %1399 = vmatpush.bf16.msra.mxu0 %v1033
    %1400 = vmatpush.bf16.msra.mxu0 %v1027
    %1401 = vmatpush.bf16.msra.mxu0 %v1021
    %1402 = vmatpush.bf16.msra.mxu0 %v1015
    %1403 = vmatpush.bf16.msra.mxu0 %v1009
    %1404 = vmatpush.bf16.msra.mxu0 %v1003
    %1405 = vmatmul.bf16.gmra.mxu0 %v87
    %v1406 = vpop.f32.mrf.mxu0
    %v1407 = vadd.f32 %v1394, %v1406
    %v1408 = vpop.f32.mrf.mxu0
    %1409 = vdwg.mxu0
    %1410 = vmatpush.bf16.msra.mxu0 %v902
    %1411 = vmatpush.bf16.msra.mxu0 %v896
    %1412 = vmatpush.bf16.msra.mxu0 %v890
    %1413 = vmatpush.bf16.msra.mxu0 %v884
    %1414 = vmatpush.bf16.msra.mxu0 %v878
    %1415 = vmatpush.bf16.msra.mxu0 %v872
    %1416 = vmatpush.bf16.msra.mxu0 %v866
    %1417 = vmatpush.bf16.msra.mxu0 %v860
    %1418 = vmatmul.bf16.gmra.mxu0 %v84
    %v1419 = vpop.f32.mrf.mxu0
    %v1420 = vadd.f32 %v1245, %v1419
    %v1421 = vpop.f32.mrf.mxu0
    %1422 = vdwg.mxu0
    %1423 = vmatpush.bf16.msra.mxu0 %v950
    %1424 = vmatpush.bf16.msra.mxu0 %v944
    %1425 = vmatpush.bf16.msra.mxu0 %v938
    %1426 = vmatpush.bf16.msra.mxu0 %v932
    %1427 = vmatpush.bf16.msra.mxu0 %v926
    %1428 = vmatpush.bf16.msra.mxu0 %v920
    %1429 = vmatpush.bf16.msra.mxu0 %v914
    %1430 = vmatpush.bf16.msra.mxu0 %v908
    %1431 = vmatmul.bf16.gmra.mxu0 %v85
    %v1432 = vpop.f32.mrf.mxu0
    %v1433 = vadd.f32 %v1420, %v1432
    %v1434 = vpop.f32.mrf.mxu0
    %1435 = vdwg.mxu0
    %1436 = vmatpush.bf16.msra.mxu0 %v998
    %1437 = vmatpush.bf16.msra.mxu0 %v992
    %1438 = vmatpush.bf16.msra.mxu0 %v986
    %1439 = vmatpush.bf16.msra.mxu0 %v980
    %1440 = vmatpush.bf16.msra.mxu0 %v974
    %1441 = vmatpush.bf16.msra.mxu0 %v968
    %1442 = vmatpush.bf16.msra.mxu0 %v962
    %1443 = vmatpush.bf16.msra.mxu0 %v956
    %1444 = vmatmul.bf16.gmra.mxu0 %v86
    %v1445 = vpop.f32.mrf.mxu0
    %v1446 = vadd.f32 %v1433, %v1445
    %v1447 = vpop.f32.mrf.mxu0
    %1448 = vdwg.mxu0
    %1449 = vmatpush.bf16.msra.mxu0 %v1046
    %1450 = vmatpush.bf16.msra.mxu0 %v1040
    %1451 = vmatpush.bf16.msra.mxu0 %v1034
    %1452 = vmatpush.bf16.msra.mxu0 %v1028
    %1453 = vmatpush.bf16.msra.mxu0 %v1022
    %1454 = vmatpush.bf16.msra.mxu0 %v1016
    %1455 = vmatpush.bf16.msra.mxu0 %v1010
    %1456 = vmatpush.bf16.msra.mxu0 %v1004
    %1457 = vmatmul.bf16.gmra.mxu0 %v87
    %v1458 = vpop.f32.mrf.mxu0
    %v1459 = vadd.f32 %v1446, %v1458
    %v1460 = vpop.f32.mrf.mxu0
    %1461 = vdwg.mxu0
    %1462 = vmatpush.bf16.msra.mxu0 %v903
    %1463 = vmatpush.bf16.msra.mxu0 %v897
    %1464 = vmatpush.bf16.msra.mxu0 %v891
    %1465 = vmatpush.bf16.msra.mxu0 %v885
    %1466 = vmatpush.bf16.msra.mxu0 %v879
    %1467 = vmatpush.bf16.msra.mxu0 %v873
    %1468 = vmatpush.bf16.msra.mxu0 %v867
    %1469 = vmatpush.bf16.msra.mxu0 %v861
    %1470 = vmatmul.bf16.gmra.mxu0 %v84
    %v1471 = vpop.f32.mrf.mxu0
    %v1472 = vadd.f32 %v1246, %v1471
    %v1473 = vpop.f32.mrf.mxu0
    %1474 = vdwg.mxu0
    %1475 = vmatpush.bf16.msra.mxu0 %v951
    %1476 = vmatpush.bf16.msra.mxu0 %v945
    %1477 = vmatpush.bf16.msra.mxu0 %v939
    %1478 = vmatpush.bf16.msra.mxu0 %v933
    %1479 = vmatpush.bf16.msra.mxu0 %v927
    %1480 = vmatpush.bf16.msra.mxu0 %v921
    %1481 = vmatpush.bf16.msra.mxu0 %v915
    %1482 = vmatpush.bf16.msra.mxu0 %v909
    %1483 = vmatmul.bf16.gmra.mxu0 %v85
    %v1484 = vpop.f32.mrf.mxu0
    %v1485 = vadd.f32 %v1472, %v1484
    %v1486 = vpop.f32.mrf.mxu0
    %1487 = vdwg.mxu0
    %1488 = vmatpush.bf16.msra.mxu0 %v999
    %1489 = vmatpush.bf16.msra.mxu0 %v993
    %1490 = vmatpush.bf16.msra.mxu0 %v987
    %1491 = vmatpush.bf16.msra.mxu0 %v981
    %1492 = vmatpush.bf16.msra.mxu0 %v975
    %1493 = vmatpush.bf16.msra.mxu0 %v969
    %1494 = vmatpush.bf16.msra.mxu0 %v963
    %1495 = vmatpush.bf16.msra.mxu0 %v957
    %1496 = vmatmul.bf16.gmra.mxu0 %v86
    %v1497 = vpop.f32.mrf.mxu0
    %v1498 = vadd.f32 %v1485, %v1497
    %v1499 = vpop.f32.mrf.mxu0
    %1500 = vdwg.mxu0
    %1501 = vmatpush.bf16.msra.mxu0 %v1047
    %1502 = vmatpush.bf16.msra.mxu0 %v1041
    %1503 = vmatpush.bf16.msra.mxu0 %v1035
    %1504 = vmatpush.bf16.msra.mxu0 %v1029
    %1505 = vmatpush.bf16.msra.mxu0 %v1023
    %1506 = vmatpush.bf16.msra.mxu0 %v1017
    %1507 = vmatpush.bf16.msra.mxu0 %v1011
    %1508 = vmatpush.bf16.msra.mxu0 %v1005
    %1509 = vmatmul.bf16.gmra.mxu0 %v87
    %v1510 = vpop.f32.mrf.mxu0
    %v1511 = vadd.f32 %v1498, %v1510
    %v1512 = vpop.f32.mrf.mxu0
    %1513 = vdwg.mxu0
    %1514 = vmatpush.bf16.msra.mxu0 %v904
    %1515 = vmatpush.bf16.msra.mxu0 %v898
    %1516 = vmatpush.bf16.msra.mxu0 %v892
    %1517 = vmatpush.bf16.msra.mxu0 %v886
    %1518 = vmatpush.bf16.msra.mxu0 %v880
    %1519 = vmatpush.bf16.msra.mxu0 %v874
    %1520 = vmatpush.bf16.msra.mxu0 %v868
    %1521 = vmatpush.bf16.msra.mxu0 %v862
    %1522 = vmatmul.bf16.gmra.mxu0 %v84
    %v1523 = vpop.f32.mrf.mxu0
    %v1524 = vadd.f32 %v1247, %v1523
    %v1525 = vpop.f32.mrf.mxu0
    %1526 = vdwg.mxu0
    %1527 = vmatpush.bf16.msra.mxu0 %v952
    %1528 = vmatpush.bf16.msra.mxu0 %v946
    %1529 = vmatpush.bf16.msra.mxu0 %v940
    %1530 = vmatpush.bf16.msra.mxu0 %v934
    %1531 = vmatpush.bf16.msra.mxu0 %v928
    %1532 = vmatpush.bf16.msra.mxu0 %v922
    %1533 = vmatpush.bf16.msra.mxu0 %v916
    %1534 = vmatpush.bf16.msra.mxu0 %v910
    %1535 = vmatmul.bf16.gmra.mxu0 %v85
    %v1536 = vpop.f32.mrf.mxu0
    %v1537 = vadd.f32 %v1524, %v1536
    %v1538 = vpop.f32.mrf.mxu0
    %1539 = vdwg.mxu0
    %1540 = vmatpush.bf16.msra.mxu0 %v1000
    %1541 = vmatpush.bf16.msra.mxu0 %v994
    %1542 = vmatpush.bf16.msra.mxu0 %v988
    %1543 = vmatpush.bf16.msra.mxu0 %v982
    %1544 = vmatpush.bf16.msra.mxu0 %v976
    %1545 = vmatpush.bf16.msra.mxu0 %v970
    %1546 = vmatpush.bf16.msra.mxu0 %v964
    %1547 = vmatpush.bf16.msra.mxu0 %v958
    %1548 = vmatmul.bf16.gmra.mxu0 %v86
    %v1549 = vpop.f32.mrf.mxu0
    %v1550 = vadd.f32 %v1537, %v1549
    %v1551 = vpop.f32.mrf.mxu0
    %1552 = vdwg.mxu0
    %1553 = vmatpush.bf16.msra.mxu0 %v1048
    %1554 = vmatpush.bf16.msra.mxu0 %v1042
    %1555 = vmatpush.bf16.msra.mxu0 %v1036
    %1556 = vmatpush.bf16.msra.mxu0 %v1030
    %1557 = vmatpush.bf16.msra.mxu0 %v1024
    %1558 = vmatpush.bf16.msra.mxu0 %v1018
    %1559 = vmatpush.bf16.msra.mxu0 %v1012
    %1560 = vmatpush.bf16.msra.mxu0 %v1006
    %1561 = vmatmul.bf16.gmra.mxu0 %v87
    %v1562 = vpop.f32.mrf.mxu0
    %v1563 = vadd.f32 %v1550, %v1562
    %v1564 = vpop.f32.mrf.mxu0
    %1565 = vdwg.mxu0
    %v1566 = vld [vmem:[#allocation5] sm:$0xff]
    %v1567 = vld [vmem:[#allocation5 + $0x8] sm:$0xff]
    %v1568 = vld [vmem:[#allocation5 + $0x10] sm:$0xff]
    %v1569 = vld [vmem:[#allocation5 + $0x18] sm:$0xff]
    %v1570 = vld [vmem:[#allocation5 + $0x20] sm:$0xff]
    %v1571 = vld [vmem:[#allocation5 + $0x28] sm:$0xff]
    %v1572 = vld [vmem:[#allocation5 + $0x30] sm:$0xff]
    %v1573 = vld [vmem:[#allocation5 + $0x38] sm:$0xff]
    %v1574 = vld [vmem:[#allocation5 + $0x40] sm:$0xff]
    %v1575 = vld [vmem:[#allocation5 + $0x48] sm:$0xff]
    %v1576 = vld [vmem:[#allocation5 + $0x50] sm:$0xff]
    %v1577 = vld [vmem:[#allocation5 + $0x58] sm:$0xff]
    %v1578 = vld [vmem:[#allocation5 + $0x60] sm:$0xff]
    %v1579 = vld [vmem:[#allocation5 + $0x68] sm:$0xff]
    %v1580 = vld [vmem:[#allocation5 + $0x70] sm:$0xff]
    %v1581 = vld [vmem:[#allocation5 + $0x78] sm:$0xff]
    %v1582 = vld [vmem:[#allocation5 + $0x80] sm:$0xff]
    %v1583 = vld [vmem:[#allocation5 + $0x88] sm:$0xff]
    %v1584 = vld [vmem:[#allocation5 + $0x90] sm:$0xff]
    %v1585 = vld [vmem:[#allocation5 + $0x98] sm:$0xff]
    %v1586 = vld [vmem:[#allocation5 + $0xa0] sm:$0xff]
    %v1587 = vld [vmem:[#allocation5 + $0xa8] sm:$0xff]
    %v1588 = vld [vmem:[#allocation5 + $0xb0] sm:$0xff]
    %v1589 = vld [vmem:[#allocation5 + $0xb8] sm:$0xff]
    %v1590 = vld [vmem:[#allocation5 + $0xc0] sm:$0xff]
    %v1591 = vld [vmem:[#allocation5 + $0xc8] sm:$0xff]
    %v1592 = vld [vmem:[#allocation5 + $0xd0] sm:$0xff]
    %v1593 = vld [vmem:[#allocation5 + $0xd8] sm:$0xff]
    %v1594 = vld [vmem:[#allocation5 + $0xe0] sm:$0xff]
    %v1595 = vld [vmem:[#allocation5 + $0xe8] sm:$0xff]
    %v1596 = vld [vmem:[#allocation5 + $0xf0] sm:$0xff]
    %v1597 = vld [vmem:[#allocation5 + $0xf8] sm:$0xff]
    %v1598 = vld [vmem:[%s4] sm:$0x3]
    %v1631 = vunpack.c.l.b16 %v1566
    %v1632 = vunpack.c.h.b16 %v1566
    %v1633 = vunpack.c.l.b16 %v1567
    %v1634 = vunpack.c.h.b16 %v1567
    %v1635 = vunpack.c.l.b16 %v1568
    %v1636 = vunpack.c.h.b16 %v1568
    %v1637 = vunpack.c.l.b16 %v1569
    %v1638 = vunpack.c.h.b16 %v1569
    %v1639 = vunpack.c.l.b16 %v1570
    %v1640 = vunpack.c.h.b16 %v1570
    %v1641 = vunpack.c.l.b16 %v1571
    %v1642 = vunpack.c.h.b16 %v1571
    %v1643 = vunpack.c.l.b16 %v1572
    %v1644 = vunpack.c.h.b16 %v1572
    %v1645 = vunpack.c.l.b16 %v1573
    %v1646 = vunpack.c.h.b16 %v1573
    %v1647 = vunpack.c.l.b16 %v1574
    %v1648 = vunpack.c.h.b16 %v1574
    %v1649 = vunpack.c.l.b16 %v1575
    %v1650 = vunpack.c.h.b16 %v1575
    %v1651 = vunpack.c.l.b16 %v1576
    %v1652 = vunpack.c.h.b16 %v1576
    %v1653 = vunpack.c.l.b16 %v1577
    %v1654 = vunpack.c.h.b16 %v1577
    %v1655 = vunpack.c.l.b16 %v1578
    %v1656 = vunpack.c.h.b16 %v1578
    %v1657 = vunpack.c.l.b16 %v1579
    %v1658 = vunpack.c.h.b16 %v1579
    %v1659 = vunpack.c.l.b16 %v1580
    %v1660 = vunpack.c.h.b16 %v1580
    %v1661 = vunpack.c.l.b16 %v1581
    %v1662 = vunpack.c.h.b16 %v1581
    %v1663 = vunpack.c.l.b16 %v1582
    %v1664 = vunpack.c.h.b16 %v1582
    %v1665 = vunpack.c.l.b16 %v1583
    %v1666 = vunpack.c.h.b16 %v1583
    %v1667 = vunpack.c.l.b16 %v1584
    %v1668 = vunpack.c.h.b16 %v1584
    %v1669 = vunpack.c.l.b16 %v1585
    %v1670 = vunpack.c.h.b16 %v1585
    %v1671 = vunpack.c.l.b16 %v1586
    %v1672 = vunpack.c.h.b16 %v1586
    %v1673 = vunpack.c.l.b16 %v1587
    %v1674 = vunpack.c.h.b16 %v1587
    %v1675 = vunpack.c.l.b16 %v1588
    %v1676 = vunpack.c.h.b16 %v1588
    %v1677 = vunpack.c.l.b16 %v1589
    %v1678 = vunpack.c.h.b16 %v1589
    %v1679 = vunpack.c.l.b16 %v1590
    %v1680 = vunpack.c.h.b16 %v1590
    %v1681 = vunpack.c.l.b16 %v1591
    %v1682 = vunpack.c.h.b16 %v1591
    %v1683 = vunpack.c.l.b16 %v1592
    %v1684 = vunpack.c.h.b16 %v1592
    %v1685 = vunpack.c.l.b16 %v1593
    %v1686 = vunpack.c.h.b16 %v1593
    %v1687 = vunpack.c.l.b16 %v1594
    %v1688 = vunpack.c.h.b16 %v1594
    %v1689 = vunpack.c.l.b16 %v1595
    %v1690 = vunpack.c.h.b16 %v1595
    %v1691 = vunpack.c.l.b16 %v1596
    %v1692 = vunpack.c.h.b16 %v1596
    %v1693 = vunpack.c.l.b16 %v1597
    %v1694 = vunpack.c.h.b16 %v1597
    %v1695 = vpack.c.b16 %v1633, %v1631
    %v1696 = vpack.c.b16 %v1634, %v1632
    %v1697 = vpack.c.b16 %v1637, %v1635
    %v1698 = vpack.c.b16 %v1638, %v1636
    %v1699 = vpack.c.b16 %v1641, %v1639
    %v1700 = vpack.c.b16 %v1642, %v1640
    %v1701 = vpack.c.b16 %v1645, %v1643
    %v1702 = vpack.c.b16 %v1646, %v1644
    %v1703 = vpack.c.b16 %v1649, %v1647
    %v1704 = vpack.c.b16 %v1650, %v1648
    %v1705 = vpack.c.b16 %v1653, %v1651
    %v1706 = vpack.c.b16 %v1654, %v1652
    %v1707 = vpack.c.b16 %v1657, %v1655
    %v1708 = vpack.c.b16 %v1658, %v1656
    %v1709 = vpack.c.b16 %v1661, %v1659
    %v1710 = vpack.c.b16 %v1662, %v1660
    %v1711 = vpack.c.b16 %v1665, %v1663
    %v1712 = vpack.c.b16 %v1666, %v1664
    %v1713 = vpack.c.b16 %v1669, %v1667
    %v1714 = vpack.c.b16 %v1670, %v1668
    %v1715 = vpack.c.b16 %v1673, %v1671
    %v1716 = vpack.c.b16 %v1674, %v1672
    %v1717 = vpack.c.b16 %v1677, %v1675
    %v1718 = vpack.c.b16 %v1678, %v1676
    %v1719 = vpack.c.b16 %v1681, %v1679
    %v1720 = vpack.c.b16 %v1682, %v1680
    %v1721 = vpack.c.b16 %v1685, %v1683
    %v1722 = vpack.c.b16 %v1686, %v1684
    %v1723 = vpack.c.b16 %v1689, %v1687
    %v1724 = vpack.c.b16 %v1690, %v1688
    %v1725 = vpack.c.b16 %v1693, %v1691
    %v1726 = vpack.c.b16 %v1694, %v1692
    %v1760 = vperm.slane %v1598, 0
    %v1761 = vperm.slane %v1598, 1
    %1764 = vmatpush.bf16.msra.mxu0 %v1709
    %1765 = vmatpush.bf16.msra.mxu0 %v1707
    %1766 = vmatpush.bf16.msra.mxu0 %v1705
    %1767 = vmatpush.bf16.msra.mxu0 %v1703
    %1768 = vmatpush.bf16.msra.mxu0 %v1701
    %1769 = vmatpush.bf16.msra.mxu0 %v1699
    %1770 = vmatpush.bf16.msra.mxu0 %v1697
    %1771 = vmatpush.bf16.msra.mxu0 %v1695
    %1772 = vmatmul.bf16.gmra.mxu0 %v86
    %v1773 = vpop.f32.mrf.mxu0
    %v1774 = vadd.f32 %v1760, %v1773
    %v1775 = vpop.f32.mrf.mxu0
    %1776 = vdwg.mxu0
    %1777 = vmatpush.bf16.msra.mxu0 %v1725
    %1778 = vmatpush.bf16.msra.mxu0 %v1723
    %1779 = vmatpush.bf16.msra.mxu0 %v1721
    %1780 = vmatpush.bf16.msra.mxu0 %v1719
    %1781 = vmatpush.bf16.msra.mxu0 %v1717
    %1782 = vmatpush.bf16.msra.mxu0 %v1715
    %1783 = vmatpush.bf16.msra.mxu0 %v1713
    %1784 = vmatpush.bf16.msra.mxu0 %v1711
    %1785 = vmatmul.bf16.gmra.mxu0 %v87
    %v1786 = vpop.f32.mrf.mxu0
    %v1787 = vadd.f32 %v1774, %v1786
    %v1788 = vpop.f32.mrf.mxu0
    %1789 = vdwg.mxu0
    %1790 = vmatpush.bf16.msra.mxu0 %v1710
    %1791 = vmatpush.bf16.msra.mxu0 %v1708
    %1792 = vmatpush.bf16.msra.mxu0 %v1706
    %1793 = vmatpush.bf16.msra.mxu0 %v1704
    %1794 = vmatpush.bf16.msra.mxu0 %v1702
    %1795 = vmatpush.bf16.msra.mxu0 %v1700
    %1796 = vmatpush.bf16.msra.mxu0 %v1698
    %1797 = vmatpush.bf16.msra.mxu0 %v1696
    %1798 = vmatmul.bf16.gmra.mxu0 %v86
    %v1799 = vpop.f32.mrf.mxu0
    %v1800 = vadd.f32 %v1761, %v1799
    %v1801 = vpop.f32.mrf.mxu0
    %1802 = vdwg.mxu0
    %1803 = vmatpush.bf16.msra.mxu0 %v1726
    %1804 = vmatpush.bf16.msra.mxu0 %v1724
    %1805 = vmatpush.bf16.msra.mxu0 %v1722
    %1806 = vmatpush.bf16.msra.mxu0 %v1720
    %1807 = vmatpush.bf16.msra.mxu0 %v1718
    %1808 = vmatpush.bf16.msra.mxu0 %v1716
    %1809 = vmatpush.bf16.msra.mxu0 %v1714
    %1810 = vmatpush.bf16.msra.mxu0 %v1712
    %1811 = vmatmul.bf16.gmra.mxu0 %v87
    %v1812 = vpop.f32.mrf.mxu0
    %v1813 = vadd.f32 %v1800, %v1812
    %v1814 = vpop.f32.mrf.mxu0
    %1815 = vdwg.mxu0
    %v1816 = vxor.u32 %v1303, 2147483648
    %v1817 = vxor.u32 %v1355, 2147483648
    %v1818 = vmul.f32 %v1816, 1.442695
    %v1819 = vpow.pop %v1818
    %v1820 = vmul.f32 %v1817, 1.442695
    %v1821 = vpow.pop %v1820
    %v1822 = vadd.f32 %v1819, 1.0
    %v1823 = vadd.f32 %v1821, 1.0
    %v1824 = vrcp.pop %v1822
    %v1825 = vmul.f32 %v1822, %v1824
    %v1826 = vsub.f32 1.0, %v1825
    %v1827 = vmul.f32 %v1824, %v1826
    %v1828 = vadd.f32 %v1824, %v1827
    %vm1829 = vweird.f32 %v1822
    %vm1830 = vweird.f32 %v1824
    %vm1831 = vmor %vm1829, %vm1830
    %v1832 = vsel %vm1831, %v1824, %v1828
    %v1833 = vand.u32 2147483647, %v1822
    %vm1834 = vcmp.eq.f32.partialorder %v1833, 8.507059e+37
    %v1835 = vand.u32 %v1822, 2147483648
    %v1836 = vor.u32 1.1754944e-38, %v1835
    %v1837 = vsel %vm1834, %v1836, %v1832
    %v1838 = vmul.f32 1.0, %v1837
    %v1839 = vrcp.pop %v1823
    %v1840 = vmul.f32 %v1823, %v1839
    %v1841 = vsub.f32 1.0, %v1840
    %v1842 = vmul.f32 %v1839, %v1841
    %v1843 = vadd.f32 %v1839, %v1842
    %vm1844 = vweird.f32 %v1823
    %vm1845 = vweird.f32 %v1839
    %vm1846 = vmor %vm1844, %vm1845
    %v1847 = vsel %vm1846, %v1839, %v1843
    %v1848 = vand.u32 2147483647, %v1823
    %vm1849 = vcmp.eq.f32.partialorder %v1848, 8.507059e+37
    %v1850 = vand.u32 %v1823, 2147483648
    %v1851 = vor.u32 1.1754944e-38, %v1850
    %v1852 = vsel %vm1849, %v1851, %v1847
    %v1853 = vmul.f32 1.0, %v1852
    %v1854 = vxor.u32 %v1407, 2147483648
    %v1855 = vxor.u32 %v1459, 2147483648
    %v1856 = vmul.f32 %v1854, 1.442695
    %v1857 = vpow.pop %v1856
    %v1858 = vmul.f32 %v1855, 1.442695
    %v1859 = vpow.pop %v1858
    %v1860 = vadd.f32 %v1857, 1.0
    %v1861 = vadd.f32 %v1859, 1.0
    %v1862 = vrcp.pop %v1860
    %v1863 = vmul.f32 %v1860, %v1862
    %v1864 = vsub.f32 1.0, %v1863
    %v1865 = vmul.f32 %v1862, %v1864
    %v1866 = vadd.f32 %v1862, %v1865
    %vm1867 = vweird.f32 %v1860
    %vm1868 = vweird.f32 %v1862
    %vm1869 = vmor %vm1867, %vm1868
    %v1870 = vsel %vm1869, %v1862, %v1866
    %v1871 = vand.u32 2147483647, %v1860
    %vm1872 = vcmp.eq.f32.partialorder %v1871, 8.507059e+37
    %v1873 = vand.u32 %v1860, 2147483648
    %v1874 = vor.u32 1.1754944e-38, %v1873
    %v1875 = vsel %vm1872, %v1874, %v1870
    %v1876 = vmul.f32 1.0, %v1875
    %v1877 = vrcp.pop %v1861
    %v1878 = vmul.f32 %v1861, %v1877
    %v1879 = vsub.f32 1.0, %v1878
    %v1880 = vmul.f32 %v1877, %v1879
    %v1881 = vadd.f32 %v1877, %v1880
    %vm1882 = vweird.f32 %v1861
    %vm1883 = vweird.f32 %v1877
    %vm1884 = vmor %vm1882, %vm1883
    %v1885 = vsel %vm1884, %v1877, %v1881
    %v1886 = vand.u32 2147483647, %v1861
    %vm1887 = vcmp.eq.f32.partialorder %v1886, 8.507059e+37
    %v1888 = vand.u32 %v1861, 2147483648
    %v1889 = vor.u32 1.1754944e-38, %v1888
    %v1890 = vsel %vm1887, %v1889, %v1885
    %v1891 = vmul.f32 1.0, %v1890
    %v1892 = vmul.f32 %v1838, %v1787
    %v1893 = vmul.f32 %v1853, %v1813
    %v1894 = vadd.f32 %v1511, %v1892
    %v1895 = vadd.f32 %v1563, %v1893
    %v1896 = vtanh.pop %v1894
    %v1897 = vtanh.pop %v1895
    %v1898 = vsub.f32 1.0, %v1876
    %v1899 = vsub.f32 1.0, %v1891
    %v1900 = vmul.f32 %v1898, %v1896
    %v1901 = vmul.f32 %v1899, %v1897
    %v1902 = vmul.f32 %v1876, %v78
    %v1903 = vmul.f32 %v1891, %v79
    %v1904 = vadd.f32 %v1900, %v1902
    %v1905 = vadd.f32 %v1901, %v1903
    %v1906 = vmul.f32 %v1904, 0.5
    %v1907 = vmul.f32 %v1905, 0.5
    %v1908 = vmul.f32 %v1904, 0.70710677
    %v1909 = vmul.f32 %v1905, 0.70710677
    %v1910 = vmul.f32 %v1908, %v1908
    %v1911 = vmin.f32 16.0, %v1910
    %v1912 = vmul.f32 %v1911, 2.1237322e-06
    %v1913 = vadd.f32 %v1912, 0.00028619796
    %v1914 = vmul.f32 %v1911, %v1913
    %v1915 = vadd.f32 %v1914, 0.0036580483
    %v1916 = vmul.f32 %v1911, %v1915
    %v1917 = vadd.f32 %v1916, 0.05243302
    %v1918 = vmul.f32 %v1911, %v1917
    %v1919 = vadd.f32 %v1918, 0.18741608
    %v1920 = vmul.f32 %v1911, %v1919
    %v1921 = vadd.f32 %v1920, 1.1283791
    %v1922 = vmul.f32 %v1908, %v1921
    %v1923 = vmul.f32 %v1911, 3.8918573e-05
    %v1924 = vadd.f32 %v1923, 0.001143296
    %v1925 = vmul.f32 %v1911, %v1924
    %v1926 = vadd.f32 %v1925, 0.014752088
    %v1927 = vmul.f32 %v1911, %v1926
    %v1928 = vadd.f32 %v1927, 0.112945676
    %v1929 = vmul.f32 %v1911, %v1928
    %v1930 = vadd.f32 %v1929, 0.4994258
    %v1931 = vmul.f32 %v1911, %v1930
    %v1932 = vadd.f32 %v1931, 1.0
    %v1933 = vrcp.pop %v1932
    %v1934 = vmul.f32 %v1932, %v1933
    %v1935 = vsub.f32 1.0, %v1934
    %v1936 = vmul.f32 %v1933, %v1935
    %v1937 = vadd.f32 %v1933, %v1936
    %vm1938 = vweird.f32 %v1932
    %vm1939 = vweird.f32 %v1933
    %vm1940 = vmor %vm1938, %vm1939
    %v1941 = vsel %vm1940, %v1933, %v1937
    %v1942 = vand.u32 2147483647, %v1932
    %vm1943 = vcmp.eq.f32.partialorder %v1942, 8.507059e+37
    %v1944 = vand.u32 %v1932, 2147483648
    %v1945 = vor.u32 1.1754944e-38, %v1944
    %v1946 = vsel %vm1943, %v1945, %v1941
    %v1947 = vmul.f32 %v1922, %v1946
    %v1948 = vmin.f32 %v1947, 1.0
    %v1949 = vmax.f32 %v1948, -1.0
    %v1950 = vmul.f32 %v1909, %v1909
    %v1951 = vmin.f32 16.0, %v1950
    %v1952 = vmul.f32 %v1951, 2.1237322e-06
    %v1953 = vadd.f32 %v1952, 0.00028619796
    %v1954 = vmul.f32 %v1951, %v1953
    %v1955 = vadd.f32 %v1954, 0.0036580483
    %v1956 = vmul.f32 %v1951, %v1955
    %v1957 = vadd.f32 %v1956, 0.05243302
    %v1958 = vmul.f32 %v1951, %v1957
    %v1959 = vadd.f32 %v1958, 0.18741608
    %v1960 = vmul.f32 %v1951, %v1959
    %v1961 = vadd.f32 %v1960, 1.1283791
    %v1962 = vmul.f32 %v1909, %v1961
    %v1963 = vmul.f32 %v1951, 3.8918573e-05
    %v1964 = vadd.f32 %v1963, 0.001143296
    %v1965 = vmul.f32 %v1951, %v1964
    %v1966 = vadd.f32 %v1965, 0.014752088
    %v1967 = vmul.f32 %v1951, %v1966
    %v1968 = vadd.f32 %v1967, 0.112945676
    %v1969 = vmul.f32 %v1951, %v1968
    %v1970 = vadd.f32 %v1969, 0.4994258
    %v1971 = vmul.f32 %v1951, %v1970
    %v1972 = vadd.f32 %v1971, 1.0
    %v1973 = vrcp.pop %v1972
    %v1974 = vmul.f32 %v1972, %v1973
    %v1975 = vsub.f32 1.0, %v1974
    %v1976 = vmul.f32 %v1973, %v1975
    %v1977 = vadd.f32 %v1973, %v1976
    %vm1978 = vweird.f32 %v1972
    %vm1979 = vweird.f32 %v1973
    %vm1980 = vmor %vm1978, %vm1979
    %v1981 = vsel %vm1980, %v1973, %v1977
    %v1982 = vand.u32 2147483647, %v1972
    %vm1983 = vcmp.eq.f32.partialorder %v1982, 8.507059e+37
    %v1984 = vand.u32 %v1972, 2147483648
    %v1985 = vor.u32 1.1754944e-38, %v1984
    %v1986 = vsel %vm1983, %v1985, %v1981
    %v1987 = vmul.f32 %v1962, %v1986
    %v1988 = vmin.f32 %v1987, 1.0
    %v1989 = vmax.f32 %v1988, -1.0
    %v1990 = vadd.f32 %v1949, 1.0
    %v1991 = vadd.f32 %v1989, 1.0
    %v1992 = vmul.f32 %v1906, %v1990
    %v1993 = vmul.f32 %v1907, %v1991
    %v1994 = vpack.c.bf16 %v1992, %v1992
    %v1995 = vpack.c.bf16 %v1993, %v1993
    %v1996 = vld [vmem:[#allocation7] sm:$0xff]
    %v1997 = vld [vmem:[#allocation7 + $0x8] sm:$0xff]
    %v1998 = vld [vmem:[#allocation7 + $0x10] sm:$0xff]
    %v1999 = vld [vmem:[#allocation7 + $0x18] sm:$0xff]
    %v2000 = vld [vmem:[#allocation7 + $0x20] sm:$0xff]
    %v2001 = vld [vmem:[#allocation7 + $0x28] sm:$0xff]
    %v2002 = vld [vmem:[#allocation7 + $0x30] sm:$0xff]
    %v2003 = vld [vmem:[#allocation7 + $0x38] sm:$0xff]
    %v2004 = vld [vmem:[#allocation7 + $0x40] sm:$0xff]
    %v2005 = vld [vmem:[#allocation7 + $0x48] sm:$0xff]
    %v2006 = vld [vmem:[#allocation7 + $0x50] sm:$0xff]
    %v2007 = vld [vmem:[#allocation7 + $0x58] sm:$0xff]
    %v2008 = vld [vmem:[#allocation7 + $0x60] sm:$0xff]
    %v2009 = vld [vmem:[#allocation7 + $0x68] sm:$0xff]
    %v2010 = vld [vmem:[#allocation7 + $0x70] sm:$0xff]
    %v2011 = vld [vmem:[#allocation7 + $0x78] sm:$0xff]
    %v2012 = vld [vmem:[#allocation7 + $0x80] sm:$0xff]
    %v2013 = vld [vmem:[#allocation7 + $0x88] sm:$0xff]
    %v2014 = vld [vmem:[#allocation7 + $0x90] sm:$0xff]
    %v2015 = vld [vmem:[#allocation7 + $0x98] sm:$0xff]
    %v2016 = vld [vmem:[#allocation7 + $0xa0] sm:$0xff]
    %v2017 = vld [vmem:[#allocation7 + $0xa8] sm:$0xff]
    %v2018 = vld [vmem:[#allocation7 + $0xb0] sm:$0xff]
    %v2019 = vld [vmem:[#allocation7 + $0xb8] sm:$0xff]
    %v2020 = vld [vmem:[#allocation7 + $0xc0] sm:$0xff]
    %v2021 = vld [vmem:[#allocation7 + $0xc8] sm:$0xff]
    %v2022 = vld [vmem:[#allocation7 + $0xd0] sm:$0xff]
    %v2023 = vld [vmem:[#allocation7 + $0xd8] sm:$0xff]
    %v2024 = vld [vmem:[#allocation7 + $0xe0] sm:$0xff]
    %v2025 = vld [vmem:[#allocation7 + $0xe8] sm:$0xff]
    %v2026 = vld [vmem:[#allocation7 + $0xf0] sm:$0xff]
    %v2027 = vld [vmem:[#allocation7 + $0xf8] sm:$0xff]
    %v2028 = vld [vmem:[%s6] sm:$0x3]
    %v2061 = vunpack.c.l.b16 %v1996
    %v2062 = vunpack.c.h.b16 %v1996
    %v2063 = vunpack.c.l.b16 %v1997
    %v2064 = vunpack.c.h.b16 %v1997
    %v2065 = vunpack.c.l.b16 %v1998
    %v2066 = vunpack.c.h.b16 %v1998
    %v2067 = vunpack.c.l.b16 %v1999
    %v2068 = vunpack.c.h.b16 %v1999
    %v2069 = vunpack.c.l.b16 %v2000
    %v2070 = vunpack.c.h.b16 %v2000
    %v2071 = vunpack.c.l.b16 %v2001
    %v2072 = vunpack.c.h.b16 %v2001
    %v2073 = vunpack.c.l.b16 %v2002
    %v2074 = vunpack.c.h.b16 %v2002
    %v2075 = vunpack.c.l.b16 %v2003
    %v2076 = vunpack.c.h.b16 %v2003
    %v2077 = vunpack.c.l.b16 %v2004
    %v2078 = vunpack.c.h.b16 %v2004
    %v2079 = vunpack.c.l.b16 %v2005
    %v2080 = vunpack.c.h.b16 %v2005
    %v2081 = vunpack.c.l.b16 %v2006
    %v2082 = vunpack.c.h.b16 %v2006
    %v2083 = vunpack.c.l.b16 %v2007
    %v2084 = vunpack.c.h.b16 %v2007
    %v2085 = vunpack.c.l.b16 %v2008
    %v2086 = vunpack.c.h.b16 %v2008
    %v2087 = vunpack.c.l.b16 %v2009
    %v2088 = vunpack.c.h.b16 %v2009
    %v2089 = vunpack.c.l.b16 %v2010
    %v2090 = vunpack.c.h.b16 %v2010
    %v2091 = vunpack.c.l.b16 %v2011
    %v2092 = vunpack.c.h.b16 %v2011
    %v2093 = vunpack.c.l.b16 %v2012
    %v2094 = vunpack.c.h.b16 %v2012
    %v2095 = vunpack.c.l.b16 %v2013
    %v2096 = vunpack.c.h.b16 %v2013
    %v2097 = vunpack.c.l.b16 %v2014
    %v2098 = vunpack.c.h.b16 %v2014
    %v2099 = vunpack.c.l.b16 %v2015
    %v2100 = vunpack.c.h.b16 %v2015
    %v2101 = vunpack.c.l.b16 %v2016
    %v2102 = vunpack.c.h.b16 %v2016
    %v2103 = vunpack.c.l.b16 %v2017
    %v2104 = vunpack.c.h.b16 %v2017
    %v2105 = vunpack.c.l.b16 %v2018
    %v2106 = vunpack.c.h.b16 %v2018
    %v2107 = vunpack.c.l.b16 %v2019
    %v2108 = vunpack.c.h.b16 %v2019
    %v2109 = vunpack.c.l.b16 %v2020
    %v2110 = vunpack.c.h.b16 %v2020
    %v2111 = vunpack.c.l.b16 %v2021
    %v2112 = vunpack.c.h.b16 %v2021
    %v2113 = vunpack.c.l.b16 %v2022
    %v2114 = vunpack.c.h.b16 %v2022
    %v2115 = vunpack.c.l.b16 %v2023
    %v2116 = vunpack.c.h.b16 %v2023
    %v2117 = vunpack.c.l.b16 %v2024
    %v2118 = vunpack.c.h.b16 %v2024
    %v2119 = vunpack.c.l.b16 %v2025
    %v2120 = vunpack.c.h.b16 %v2025
    %v2121 = vunpack.c.l.b16 %v2026
    %v2122 = vunpack.c.h.b16 %v2026
    %v2123 = vunpack.c.l.b16 %v2027
    %v2124 = vunpack.c.h.b16 %v2027
    %v2125 = vpack.c.b16 %v2063, %v2061
    %v2126 = vpack.c.b16 %v2064, %v2062
    %v2127 = vpack.c.b16 %v2067, %v2065
    %v2128 = vpack.c.b16 %v2068, %v2066
    %v2129 = vpack.c.b16 %v2071, %v2069
    %v2130 = vpack.c.b16 %v2072, %v2070
    %v2131 = vpack.c.b16 %v2075, %v2073
    %v2132 = vpack.c.b16 %v2076, %v2074
    %v2133 = vpack.c.b16 %v2079, %v2077
    %v2134 = vpack.c.b16 %v2080, %v2078
    %v2135 = vpack.c.b16 %v2083, %v2081
    %v2136 = vpack.c.b16 %v2084, %v2082
    %v2137 = vpack.c.b16 %v2087, %v2085
    %v2138 = vpack.c.b16 %v2088, %v2086
    %v2139 = vpack.c.b16 %v2091, %v2089
    %v2140 = vpack.c.b16 %v2092, %v2090
    %v2141 = vpack.c.b16 %v2095, %v2093
    %v2142 = vpack.c.b16 %v2096, %v2094
    %v2143 = vpack.c.b16 %v2099, %v2097
    %v2144 = vpack.c.b16 %v2100, %v2098
    %v2145 = vpack.c.b16 %v2103, %v2101
    %v2146 = vpack.c.b16 %v2104, %v2102
    %v2147 = vpack.c.b16 %v2107, %v2105
    %v2148 = vpack.c.b16 %v2108, %v2106
    %v2149 = vpack.c.b16 %v2111, %v2109
    %v2150 = vpack.c.b16 %v2112, %v2110
    %v2151 = vpack.c.b16 %v2115, %v2113
    %v2152 = vpack.c.b16 %v2116, %v2114
    %v2153 = vpack.c.b16 %v2119, %v2117
    %v2154 = vpack.c.b16 %v2120, %v2118
    %v2155 = vpack.c.b16 %v2123, %v2121
    %v2156 = vpack.c.b16 %v2124, %v2122
    %v2190 = vperm.slane %v2028, 0
    %v2191 = vperm.slane %v2028, 1
    %2194 = vmatpush.bf16.msra.mxu0 %v2139
    %2195 = vmatpush.bf16.msra.mxu0 %v2137
    %2196 = vmatpush.bf16.msra.mxu0 %v2135
    %2197 = vmatpush.bf16.msra.mxu0 %v2133
    %2198 = vmatpush.bf16.msra.mxu0 %v2131
    %2199 = vmatpush.bf16.msra.mxu0 %v2129
    %2200 = vmatpush.bf16.msra.mxu0 %v2127
    %2201 = vmatpush.bf16.msra.mxu0 %v2125
    %2202 = vmatmul.bf16.gmra.mxu0 %v1994
    %v2203 = vpop.f32.mrf.mxu0
    %v2204 = vadd.f32 %v2190, %v2203
    %v2205 = vpop.f32.mrf.mxu0
    %2206 = vdwg.mxu0
    %2207 = vmatpush.bf16.msra.mxu0 %v2155
    %2208 = vmatpush.bf16.msra.mxu0 %v2153
    %2209 = vmatpush.bf16.msra.mxu0 %v2151
    %2210 = vmatpush.bf16.msra.mxu0 %v2149
    %2211 = vmatpush.bf16.msra.mxu0 %v2147
    %2212 = vmatpush.bf16.msra.mxu0 %v2145
    %2213 = vmatpush.bf16.msra.mxu0 %v2143
    %2214 = vmatpush.bf16.msra.mxu0 %v2141
    %2215 = vmatmul.bf16.gmra.mxu0 %v1995
    %v2216 = vpop.f32.mrf.mxu0
    %v2217 = vadd.f32 %v2204, %v2216
    %v2218 = vpop.f32.mrf.mxu0
    %2219 = vdwg.mxu0
    %2220 = vmatpush.bf16.msra.mxu0 %v2140
    %2221 = vmatpush.bf16.msra.mxu0 %v2138
    %2222 = vmatpush.bf16.msra.mxu0 %v2136
    %2223 = vmatpush.bf16.msra.mxu0 %v2134
    %2224 = vmatpush.bf16.msra.mxu0 %v2132
    %2225 = vmatpush.bf16.msra.mxu0 %v2130
    %2226 = vmatpush.bf16.msra.mxu0 %v2128
    %2227 = vmatpush.bf16.msra.mxu0 %v2126
    %2228 = vmatmul.bf16.gmra.mxu0 %v1994
    %v2229 = vpop.f32.mrf.mxu0
    %v2230 = vadd.f32 %v2191, %v2229
    %v2231 = vpop.f32.mrf.mxu0
    %2232 = vdwg.mxu0
    %2233 = vmatpush.bf16.msra.mxu0 %v2156
    %2234 = vmatpush.bf16.msra.mxu0 %v2154
    %2235 = vmatpush.bf16.msra.mxu0 %v2152
    %2236 = vmatpush.bf16.msra.mxu0 %v2150
    %2237 = vmatpush.bf16.msra.mxu0 %v2148
    %2238 = vmatpush.bf16.msra.mxu0 %v2146
    %2239 = vmatpush.bf16.msra.mxu0 %v2144
    %2240 = vmatpush.bf16.msra.mxu0 %v2142
    %2241 = vmatmul.bf16.gmra.mxu0 %v1995
    %v2242 = vpop.f32.mrf.mxu0
    %v2243 = vadd.f32 %v2230, %v2242
    %v2244 = vpop.f32.mrf.mxu0
    %2245 = vdwg.mxu0
    %v2248 = vrot.slane %v2243, 7
    %vm2249 = vcmask 1040384
    %v2250 = vsel %vm2249, %v2217, %v2248
    %v2252 = vlaneseq
    %vm2253 = vcmp.ge.s32.totalorder %v2252, 0
    %vm2254 = vcmp.lt.s32.totalorder %v2252, 256
    %vm2255 = vmand %vm2253, %vm2254
    %2256 = vst.msk [vmem:[#allocation8] sm:$0x3] %vm2255, %v2250
    // Predicated region
    $region42: #{model_forward.1} parent=1 // pred_check
      _
    $region43: #{model_forward.1} parent=1 // pred_check_branch
      %2258 = sbr.rel (0) target = $region45
    $region44: #{model_forward.1} parent=1 // pred_region
      %2260 = vsyncadd [#allocation4], 0
      %s2262 = sshll.u32 [#allocation8], 4
      %s2263 = int_to_ptr.vmem [resolvable:$true] %s2262
      %s2264 = sshll.u32 %s7, 4
      %s2265 = int_to_ptr.hbm [resolvable:$true] %s2264
      %2267 = dma.vmem_to_hbm [thread:$0]  %s2263, 32, %s2265, [#allocation4]
    $region45: #{model_forward.1} parent=1 // pred_fallthru
      _
    // Predicated region
    $region46: #{model_forward.1} parent=1 // pred_check
      _
    $region47: #{model_forward.1} parent=1 // pred_check_branch
      %2269 = sbr.rel (0) target = $region49
    $region48: #{model_forward.1} parent=1 // pred_region
      %2271 = dma.done [#allocation4], 32
    $region49: #{model_forward.1} parent=1 // pred_fallthru
      _
    %2272 = vsyncpa [#allocation3], 1
    %2273 = vsyncpa [#allocation6], 1
    %2274 = vsyncpa [#allocation4], 1

</llo_original>
